<compile_context>
chip_gen: v5e
topology: v5e:2x2
jax: 0.10.0
libtpu: 0.0.40
codegen_flags: <defaults>
</compile_context>

<pallas_src>
import jax
import jax.numpy as jnp
from jax import lax
from jax.experimental import pallas as pl
from jax.experimental.pallas import tpu as pltpu


# ----------------------------------------------------------------------------
# Fused encoder+decoder LSTM kernel (whole autoencoder, time-major).
# ----------------------------------------------------------------------------
def _lstm_ae_kernel(x_ref, w_ih_e_ref, w_hh_e_ref, b_e_ref,
                    w_ih_d_ref, w_hh_d_ref, b_d_ref,
                    out_ref,
                    h_e_ref, c_e_ref, h_d_ref, c_d_ref):
    # x_ref:   (TT, TB, D)   time-major input tile
    # w_ih_e:  (D, 4He)      encoder input->gates
    # w_hh_e:  (He, 4He)     encoder hidden->gates
    # b_e:     (1, 4He)
    # w_ih_d:  (He, 4Hd)     decoder input->gates
    # w_hh_d:  (Hd, 4Hd)     decoder hidden->gates
    # b_d:     (1, 4Hd)
    # out_ref: (TT, TB, Hd)  time-major decoder output tile
    # scratch: h/c for encoder and decoder, carried across time tiles.
    TT, TB, D = x_ref.shape
    He = w_hh_e_ref.shape[0]
    Hd = w_hh_d_ref.shape[0]

    # Fresh state at the first time tile of each batch shard.
    @pl.when(pl.program_id(1) == 0)
    def _init():
        h_e_ref[...] = jnp.zeros_like(h_e_ref)
        c_e_ref[...] = jnp.zeros_like(c_e_ref)
        h_d_ref[...] = jnp.zeros_like(h_d_ref)
        c_d_ref[...] = jnp.zeros_like(c_d_ref)

    w_hh_e = w_hh_e_ref[...]
    w_ih_d = w_ih_d_ref[...]
    w_hh_d = w_hh_d_ref[...]

    # Hoisted decoder bias broadcast (one op, not one per timestep).
    b_d = jnp.broadcast_to(b_d_ref[...], (TB, 4 * Hd))

    # Hoisted encoder input projection + bias for the whole tile: one well-shaped
    # (TT*TB, D) @ (D, 4He) MXU matmul + one add, off the serial recurrence path.
    gx = jnp.dot(x_ref[...].reshape(TT * TB, D), w_ih_e_ref[...],
                 preferred_element_type=jnp.float32)            # (TT*TB, 4He)
    gx = gx + jnp.broadcast_to(b_e_ref[...], (TT * TB, 4 * He))

    h_e = h_e_ref[...]
    c_e = c_e_ref[...]
    h_d = h_d_ref[...]
    c_d = c_d_ref[...]

    # Fully unrolled recurrence (TT is a small compile-time constant).
    for t in range(TT):
        # ---- encoder cell ----
        g_e = (gx[t * TB:(t + 1) * TB, :]
               + jnp.dot(h_e, w_hh_e, preferred_element_type=jnp.float32))
        sig_e = jax.nn.sigmoid(g_e)              # full-width (TB, 4He) EUP op (i,f,o)
        i_e = sig_e[:, 0 * He:1 * He]
        f_e = sig_e[:, 1 * He:2 * He]
        o_e = sig_e[:, 3 * He:4 * He]
        g_g = jnp.tanh(g_e[:, 2 * He:3 * He])    # tanh only on the cell-gate slice
        c_e = f_e * c_e + i_e * g_g
        h_e = o_e * jnp.tanh(c_e)

        # ---- decoder cell (consumes same-timestep encoder hidden state) ----
        g_d = (jnp.dot(h_e, w_ih_d, preferred_element_type=jnp.float32)
               + jnp.dot(h_d, w_hh_d, preferred_element_type=jnp.float32)
               + b_d)
        sig_d = jax.nn.sigmoid(g_d)
        i_d = sig_d[:, 0 * Hd:1 * Hd]
        f_d = sig_d[:, 1 * Hd:2 * Hd]
        o_d = sig_d[:, 3 * Hd:4 * Hd]
        gg_d = jnp.tanh(g_d[:, 2 * Hd:3 * Hd])
        c_d = f_d * c_d + i_d * gg_d
        h_d = o_d * jnp.tanh(c_d)

        out_ref[t] = h_d

    # Carry state to the next time tile.
    h_e_ref[...] = h_e
    c_e_ref[...] = c_e
    h_d_ref[...] = h_d
    c_d_ref[...] = c_d


def _round_up(n, m):
    return ((n + m - 1) // m) * m


def _pad_gate_params(w_ih, w_hh, bias, in_pad, h_pad):
    """Zero-pad LSTM params so the hidden size becomes h_pad (and the input-side
    row count becomes in_pad). Each of the 4 gate blocks is padded independently.
    Zero-padded hidden units stay identically zero through the recurrence, so
    this is exact (real output columns are unchanged)."""
    in_dim, four_h = w_ih.shape
    h = four_h // 4

    def pad_w(w, rows, rows_to):
        w4 = w.reshape(rows, 4, h)
        w4 = jnp.pad(w4, ((0, rows_to - rows), (0, 0), (0, h_pad - h)))
        return w4.reshape(rows_to, 4 * h_pad)

    w_ih_p = pad_w(w_ih, in_dim, in_pad)
    w_hh_p = pad_w(w_hh, h, h_pad)
    b_p = jnp.pad(bias.reshape(4, h), ((0, 0), (0, h_pad - h))).reshape(4 * h_pad)
    return w_ih_p, w_hh_p, b_p


def lstm_ae_forward(x, enc_params, dec_params, *, tile_t=8, tile_b=8):
    """Fused LSTM autoencoder forward. x: (B, T, D) -> (B, T, Hd)."""
    w_ih_e, w_hh_e, b_e = enc_params
    w_ih_d, w_hh_d, b_d = dec_params
    B, T, D = x.shape
    He = w_hh_e.shape[0]
    Hd = w_hh_d.shape[0]

    # Pad hidden dims so each gate block is lane-aligned (4H multiple of 128).
    He_p = _round_up(He, 32)
    Hd_p = _round_up(Hd, 32)
    w_ih_e_p, w_hh_e_p, b_e_p = _pad_gate_params(
        w_ih_e.astype(jnp.float32), w_hh_e.astype(jnp.float32),
        b_e.astype(jnp.float32), D, He_p)
    w_ih_d_p, w_hh_d_p, b_d_p = _pad_gate_params(
        w_ih_d.astype(jnp.float32), w_hh_d.astype(jnp.float32),
        b_d.astype(jnp.float32), He_p, Hd_p)

    tile_t = max(1, min(tile_t, T))
    T_pad = _round_up(T, tile_t)
    B_pad = _round_up(B, tile_b)   # pad batch to full 8-sublane rows

    x_tm = jnp.transpose(x.astype(jnp.float32), (1, 0, 2))          # (T, B, D)
    x_tm = jnp.pad(x_tm, ((0, T_pad - T), (0, B_pad - B), (0, 0)))  # (T_pad, B_pad, D)

    nb = B_pad // tile_b
    nt = T_pad // tile_t

    # Advisory cost estimate for XLA scheduling around the custom call.
    flops = 2 * T_pad * B_pad * (D * 4 * He_p + He_p * 4 * He_p
                                 + He_p * 4 * Hd_p + Hd_p * 4 * Hd_p)
    transcendentals = T_pad * B_pad * (6 * He_p + 6 * Hd_p)
    bytes_accessed = 4 * (T_pad * B_pad * (D + Hd_p)
                          + D * 4 * He_p + He_p * 4 * He_p + 4 * He_p
                          + He_p * 4 * Hd_p + Hd_p * 4 * Hd_p + 4 * Hd_p)
    cost = pl.CostEstimate(flops=int(flops),
                           transcendentals=int(transcendentals),
                           bytes_accessed=int(bytes_accessed))

    # Generous VMEM bound computed from the actual tile footprint (with margin
    # for (8,128) tile padding and double-buffering).
    vmem_bytes = 4 * (2 * tile_t * tile_b * (D + Hd_p)
                      + D * 4 * He_p + He_p * 4 * He_p + 4 * He_p
                      + He_p * 4 * Hd_p + Hd_p * 4 * Hd_p + 4 * Hd_p
                      + 2 * tile_b * (He_p + Hd_p)
                      + tile_t * tile_b * 4 * He_p)
    vmem_limit = int(min(max(8 * vmem_bytes, 8 * 1024 * 1024), 96 * 1024 * 1024))

    grid_spec = pltpu.PrefetchScalarGridSpec(
        num_scalar_prefetch=0,
        grid=(nb, nt),
        in_specs=[
            pl.BlockSpec((tile_t, tile_b, D), lambda b, t: (t, b, 0)),     # x tile
            pl.BlockSpec((D, 4 * He_p), lambda b, t: (0, 0)),              # enc W_ih
            pl.BlockSpec((He_p, 4 * He_p), lambda b, t: (0, 0)),           # enc W_hh
            pl.BlockSpec((1, 4 * He_p), lambda b, t: (0, 0)),              # enc bias
            pl.BlockSpec((He_p, 4 * Hd_p), lambda b, t: (0, 0)),           # dec W_ih
            pl.BlockSpec((Hd_p, 4 * Hd_p), lambda b, t: (0, 0)),           # dec W_hh
            pl.BlockSpec((1, 4 * Hd_p), lambda b, t: (0, 0)),              # dec bias
        ],
        out_specs=pl.BlockSpec((tile_t, tile_b, Hd_p), lambda b, t: (t, b, 0)),
        scratch_shapes=[
            pltpu.VMEM((tile_b, He_p), jnp.float32),   # h_enc
            pltpu.VMEM((tile_b, He_p), jnp.float32),   # c_enc
            pltpu.VMEM((tile_b, Hd_p), jnp.float32),   # h_dec
            pltpu.VMEM((tile_b, Hd_p), jnp.float32),   # c_dec
        ],
    )

    out_tm = pl.pallas_call(
        _lstm_ae_kernel,
        out_shape=jax.ShapeDtypeStruct((T_pad, B_pad, Hd_p), jnp.float32),
        grid_spec=grid_spec,
        compiler_params=pltpu.CompilerParams(
            dimension_semantics=("parallel", "arbitrary"),
            vmem_limit_bytes=vmem_limit),
        cost_estimate=cost,
    )(x_tm,
      w_ih_e_p, w_hh_e_p, b_e_p.reshape(1, -1),
      w_ih_d_p, w_hh_d_p, b_d_p.reshape(1, -1))

    # Drop time/batch/hidden padding and return to (B, T, Hd).
    return jnp.transpose(out_tm[:T, :B, :Hd], (1, 0, 2))


# ----------------------------------------------------------------------------
# Parameter construction (deterministic): blitz-style variational parameters
# (mu, rho) and a single fixed-key sample  W = mu + softplus(rho) * eps.
# ----------------------------------------------------------------------------
def _sample_bayesian_lstm_params(key, in_dim, out_dim, posterior_rho_init=-3.0):
    k_mu_ih, k_mu_hh, k_mu_b, k_e_ih, k_e_hh, k_e_b = jax.random.split(key, 6)

    def sample(k_mu, k_eps, shape):
        mu = 0.1 * jax.random.normal(k_mu, shape, dtype=jnp.float32)
        rho = jnp.full(shape, posterior_rho_init, dtype=jnp.float32)
        sigma = jnp.log1p(jnp.exp(rho))  # softplus
        eps = jax.random.normal(k_eps, shape, dtype=jnp.float32)
        return mu + sigma * eps

    w_ih = sample(k_mu_ih, k_e_ih, (in_dim, 4 * out_dim))
    w_hh = sample(k_mu_hh, k_e_hh, (out_dim, 4 * out_dim))
    bias = sample(k_mu_b, k_e_b, (4 * out_dim,))
    return w_ih, w_hh, bias


class LSTM_AE_Pallas:
    """JAX/Pallas equivalent of the PyTorch LSTM_AE forward pass."""

    def __init__(self, input_dim, hidden_size, output_dim, key):
        k_enc, k_dec = jax.random.split(key)
        self.enc = _sample_bayesian_lstm_params(k_enc, input_dim, hidden_size)
        self.dec = _sample_bayesian_lstm_params(k_dec, hidden_size, output_dim)

    def __call__(self, x):
        return lstm_ae_forward(x, self.enc, self.dec)


# ----------------------------------------------------------------------------
# Pure-JAX reference (same math) for a correctness check.
# ----------------------------------------------------------------------------
def _lstm_layer_ref(x_btd, w_ih, w_hh, bias):
    B, T, _ = x_btd.shape
    H = w_hh.shape[0]

    def step(carry, x_t):
        h, c = carry
        gates = x_t @ w_ih + h @ w_hh + bias
        i_g = jax.nn.sigmoid(gates[:, 0 * H:1 * H])
        f_g = jax.nn.sigmoid(gates[:, 1 * H:2 * H])
        g_g = jnp.tanh(gates[:, 2 * H:3 * H])
        o_g = jax.nn.sigmoid(gates[:, 3 * H:4 * H])
        c = f_g * c + i_g * g_g
        h = o_g * jnp.tanh(c)
        return (h, c), h

    init = (jnp.zeros((B, H), jnp.float32), jnp.zeros((B, H), jnp.float32))
    _, hs = lax.scan(step, init, jnp.transpose(x_btd, (1, 0, 2)))
    return jnp.transpose(hs, (1, 0, 2))


if __name__ == "__main__":
    key = jax.random.PRNGKey(0)
    k_param, k_x = jax.random.split(key)

    batch, seq, input_dim, hidden, output_dim = 4, 8, 16, 32, 16
    x = jax.random.normal(k_x, (batch, seq, input_dim), dtype=jnp.float32)

    model = LSTM_AE_Pallas(input_dim, hidden, output_dim, k_param)

    out = jax.block_until_ready(model(x))
    assert out.shape == (batch, seq, output_dim), out.shape

    # sanity check against pure-JAX reference (encoder then decoder)
    ref = _lstm_layer_ref(_lstm_layer_ref(x, *model.enc), *model.dec)
    assert jnp.allclose(out, ref, atol=1e-4, rtol=1e-4), "mismatch vs reference"

    print("KERNEL_OK")
</pallas_src>

<mosaic_0001>
module attributes {stable_mosaic.version = 11 : i64} {
  func.func @_lstm_ae_kernel(%arg0: i32, %arg1: i32, %arg2: memref<8x8x16xf32, #tpu.memory_space<vmem>>, %arg3: memref<16x128xf32, #tpu.memory_space<vmem>>, %arg4: memref<32x128xf32, #tpu.memory_space<vmem>>, %arg5: memref<1x128xf32, #tpu.memory_space<vmem>>, %arg6: memref<32x128xf32, #tpu.memory_space<vmem>>, %arg7: memref<32x128xf32, #tpu.memory_space<vmem>>, %arg8: memref<1x128xf32, #tpu.memory_space<vmem>>, %arg9: memref<8x8x32xf32, #tpu.memory_space<vmem>>, %arg10: memref<8x32xf32, #tpu.memory_space<vmem>>, %arg11: memref<8x32xf32, #tpu.memory_space<vmem>>, %arg12: memref<8x32xf32, #tpu.memory_space<vmem>>, %arg13: memref<8x32xf32, #tpu.memory_space<vmem>>) attributes {dimension_semantics = [#tpu.dimension_semantics<parallel>, #tpu.dimension_semantics<arbitrary>], iteration_bounds = array<i64: 1, 1>, scalar_prefetch = 0 : i64, scratch_operands = 4 : i64, tpu.core_type = #tpu.core_type<tc>, window_params = [{transform_indices = @transform_0, window_bounds = array<i64: 8, 8, 16>}, {pipeline_mode = #tpu.pipeline_mode<synchronous>, transform_indices = @transform_1, window_bounds = array<i64: 16, 128>}, {pipeline_mode = #tpu.pipeline_mode<synchronous>, transform_indices = @transform_2, window_bounds = array<i64: 32, 128>}, {pipeline_mode = #tpu.pipeline_mode<synchronous>, transform_indices = @transform_3, window_bounds = array<i64: 1, 128>}, {pipeline_mode = #tpu.pipeline_mode<synchronous>, transform_indices = @transform_4, window_bounds = array<i64: 32, 128>}, {pipeline_mode = #tpu.pipeline_mode<synchronous>, transform_indices = @transform_5, window_bounds = array<i64: 32, 128>}, {pipeline_mode = #tpu.pipeline_mode<synchronous>, transform_indices = @transform_6, window_bounds = array<i64: 1, 128>}, {transform_indices = @transform_7, window_bounds = array<i64: 8, 8, 32>}]} {
    %c0_i32 = arith.constant 0 : i32
    %0 = arith.cmpi eq, %arg1, %c0_i32 : i32
    %1 = arith.extui %0 : i1 to i32
    %c0_i32_0 = arith.constant 0 : i32
    %2 = arith.cmpi ne, %1, %c0_i32_0 : i32
    scf.if %2 {
      %cst_88 = arith.constant 0.000000e+00 : f32
      %345 = vector.broadcast %cst_88 : f32 to vector<8x32xf32>
      %c0_89 = arith.constant 0 : index
      %c0_90 = arith.constant 0 : index
      %346 = vector.load %arg10[%c0_89, %c0_90] : memref<8x32xf32, #tpu.memory_space<vmem>>, vector<8x32xf32>
      tpu.vector_store %arg10[%c0_89, %c0_90], %345 {strides = array<i32>} : memref<8x32xf32, #tpu.memory_space<vmem>>, vector<8x32xf32>,
      %cst_91 = arith.constant 0.000000e+00 : f32
      %347 = vector.broadcast %cst_91 : f32 to vector<8x32xf32>
      %c0_92 = arith.constant 0 : index
      %c0_93 = arith.constant 0 : index
      %348 = vector.load %arg11[%c0_92, %c0_93] : memref<8x32xf32, #tpu.memory_space<vmem>>, vector<8x32xf32>
      tpu.vector_store %arg11[%c0_92, %c0_93], %347 {strides = array<i32>} : memref<8x32xf32, #tpu.memory_space<vmem>>, vector<8x32xf32>,
      %cst_94 = arith.constant 0.000000e+00 : f32
      %349 = vector.broadcast %cst_94 : f32 to vector<8x32xf32>
      %c0_95 = arith.constant 0 : index
      %c0_96 = arith.constant 0 : index
      %350 = vector.load %arg12[%c0_95, %c0_96] : memref<8x32xf32, #tpu.memory_space<vmem>>, vector<8x32xf32>
      tpu.vector_store %arg12[%c0_95, %c0_96], %349 {strides = array<i32>} : memref<8x32xf32, #tpu.memory_space<vmem>>, vector<8x32xf32>,
      %cst_97 = arith.constant 0.000000e+00 : f32
      %351 = vector.broadcast %cst_97 : f32 to vector<8x32xf32>
      %c0_98 = arith.constant 0 : index
      %c0_99 = arith.constant 0 : index
      %352 = vector.load %arg13[%c0_98, %c0_99] : memref<8x32xf32, #tpu.memory_space<vmem>>, vector<8x32xf32>
      tpu.vector_store %arg13[%c0_98, %c0_99], %351 {strides = array<i32>} : memref<8x32xf32, #tpu.memory_space<vmem>>, vector<8x32xf32>,
    } else {
    }
    %c0 = arith.constant 0 : index
    %c0_1 = arith.constant 0 : index
    %3 = vector.load %arg4[%c0, %c0_1] : memref<32x128xf32, #tpu.memory_space<vmem>>, vector<32x128xf32>
    %c0_2 = arith.constant 0 : index
    %c0_3 = arith.constant 0 : index
    %4 = vector.load %arg6[%c0_2, %c0_3] : memref<32x128xf32, #tpu.memory_space<vmem>>, vector<32x128xf32>
    %c0_4 = arith.constant 0 : index
    %c0_5 = arith.constant 0 : index
    %5 = vector.load %arg7[%c0_4, %c0_5] : memref<32x128xf32, #tpu.memory_space<vmem>>, vector<32x128xf32>
    %c0_6 = arith.constant 0 : index
    %c0_7 = arith.constant 0 : index
    %6 = vector.load %arg8[%c0_6, %c0_7] : memref<1x128xf32, #tpu.memory_space<vmem>>, vector<1x128xf32>
    %7 = vector.shape_cast %6 : vector<1x128xf32> to vector<1x128xf32>
    %8 = vector.broadcast %7 : vector<1x128xf32> to vector<8x128xf32>
    %c0_8 = arith.constant 0 : index
    %c0_9 = arith.constant 0 : index
    %c0_10 = arith.constant 0 : index
    %9 = vector.load %arg2[%c0_8, %c0_9, %c0_10] : memref<8x8x16xf32, #tpu.memory_space<vmem>>, vector<8x8x16xf32>
    %10 = vector.shape_cast %9 : vector<8x8x16xf32> to vector<64x16xf32>
    %c0_11 = arith.constant 0 : index
    %c0_12 = arith.constant 0 : index
    %11 = vector.load %arg3[%c0_11, %c0_12] : memref<16x128xf32, #tpu.memory_space<vmem>>, vector<16x128xf32>
    %cst = arith.constant dense<0.000000e+00> : vector<64x128xf32>
    %12 = tpu.matmul %10, %11, %cst {dimension_numbers = #tpu.dot_dimension_numbers<[1], [0], [0], [1], [0, 0, 1, 1], [], []>} : vector<64x16xf32>, vector<16x128xf32>, vector<64x128xf32> -> vector<64x128xf32>
    %c0_13 = arith.constant 0 : index
    %c0_14 = arith.constant 0 : index
    %13 = vector.load %arg5[%c0_13, %c0_14] : memref<1x128xf32, #tpu.memory_space<vmem>>, vector<1x128xf32>
    %14 = vector.shape_cast %13 : vector<1x128xf32> to vector<1x128xf32>
    %15 = vector.broadcast %14 : vector<1x128xf32> to vector<64x128xf32>
    %16 = arith.addf %12, %15 : vector<64x128xf32>
    %c0_15 = arith.constant 0 : index
    %c0_16 = arith.constant 0 : index
    %17 = vector.load %arg10[%c0_15, %c0_16] : memref<8x32xf32, #tpu.memory_space<vmem>>, vector<8x32xf32>
    %c0_17 = arith.constant 0 : index
    %c0_18 = arith.constant 0 : index
    %18 = vector.load %arg11[%c0_17, %c0_18] : memref<8x32xf32, #tpu.memory_space<vmem>>, vector<8x32xf32>
    %c0_19 = arith.constant 0 : index
    %c0_20 = arith.constant 0 : index
    %19 = vector.load %arg12[%c0_19, %c0_20] : memref<8x32xf32, #tpu.memory_space<vmem>>, vector<8x32xf32>
    %c0_21 = arith.constant 0 : index
    %c0_22 = arith.constant 0 : index
    %20 = vector.load %arg13[%c0_21, %c0_22] : memref<8x32xf32, #tpu.memory_space<vmem>>, vector<8x32xf32>
    %21 = vector.extract_strided_slice %16 {offsets = [0, 0], sizes = [8, 128], strides = [1, 1]} : vector<64x128xf32> to vector<8x128xf32>
    %cst_23 = arith.constant dense<0.000000e+00> : vector<8x128xf32>
    %22 = tpu.matmul %17, %3, %cst_23 {dimension_numbers = #tpu.dot_dimension_numbers<[1], [0], [0], [1], [0, 0, 1, 1], [], []>} : vector<8x32xf32>, vector<32x128xf32>, vector<8x128xf32> -> vector<8x128xf32>
    %23 = arith.addf %21, %22 : vector<8x128xf32>
    %24 = arith.negf %23 : vector<8x128xf32>
    %25 = math.exp %24 : vector<8x128xf32>
    %cst_24 = arith.constant 1.000000e+00 : f32
    %26 = vector.broadcast %cst_24 : f32 to vector<8x128xf32>
    %27 = arith.addf %26, %25 : vector<8x128xf32>
    %28 = arith.divf %26, %27 : vector<8x128xf32>
    %29 = vector.extract_strided_slice %28 {offsets = [0, 0], sizes = [8, 32], strides = [1, 1]} : vector<8x128xf32> to vector<8x32xf32>
    %30 = vector.extract_strided_slice %28 {offsets = [0, 32], sizes = [8, 32], strides = [1, 1]} : vector<8x128xf32> to vector<8x32xf32>
    %31 = vector.extract_strided_slice %28 {offsets = [0, 96], sizes = [8, 32], strides = [1, 1]} : vector<8x128xf32> to vector<8x32xf32>
    %32 = vector.extract_strided_slice %23 {offsets = [0, 64], sizes = [8, 32], strides = [1, 1]} : vector<8x128xf32> to vector<8x32xf32>
    %33 = math.tanh %32 : vector<8x32xf32>
    %34 = arith.mulf %30, %18 : vector<8x32xf32>
    %35 = arith.mulf %29, %33 : vector<8x32xf32>
    %36 = arith.addf %34, %35 : vector<8x32xf32>
    %37 = math.tanh %36 : vector<8x32xf32>
    %38 = arith.mulf %31, %37 : vector<8x32xf32>
    %cst_25 = arith.constant dense<0.000000e+00> : vector<8x128xf32>
    %39 = tpu.matmul %38, %4, %cst_25 {dimension_numbers = #tpu.dot_dimension_numbers<[1], [0], [0], [1], [0, 0, 1, 1], [], []>} : vector<8x32xf32>, vector<32x128xf32>, vector<8x128xf32> -> vector<8x128xf32>
    %cst_26 = arith.constant dense<0.000000e+00> : vector<8x128xf32>
    %40 = tpu.matmul %19, %5, %cst_26 {dimension_numbers = #tpu.dot_dimension_numbers<[1], [0], [0], [1], [0, 0, 1, 1], [], []>} : vector<8x32xf32>, vector<32x128xf32>, vector<8x128xf32> -> vector<8x128xf32>
    %41 = arith.addf %39, %40 : vector<8x128xf32>
    %42 = arith.addf %41, %8 : vector<8x128xf32>
    %43 = arith.negf %42 : vector<8x128xf32>
    %44 = math.exp %43 : vector<8x128xf32>
    %cst_27 = arith.constant 1.000000e+00 : f32
    %45 = vector.broadcast %cst_27 : f32 to vector<8x128xf32>
    %46 = arith.addf %45, %44 : vector<8x128xf32>
    %47 = arith.divf %45, %46 : vector<8x128xf32>
    %48 = vector.extract_strided_slice %47 {offsets = [0, 0], sizes = [8, 32], strides = [1, 1]} : vector<8x128xf32> to vector<8x32xf32>
    %49 = vector.extract_strided_slice %47 {offsets = [0, 32], sizes = [8, 32], strides = [1, 1]} : vector<8x128xf32> to vector<8x32xf32>
    %50 = vector.extract_strided_slice %47 {offsets = [0, 96], sizes = [8, 32], strides = [1, 1]} : vector<8x128xf32> to vector<8x32xf32>
    %51 = vector.extract_strided_slice %42 {offsets = [0, 64], sizes = [8, 32], strides = [1, 1]} : vector<8x128xf32> to vector<8x32xf32>
    %52 = math.tanh %51 : vector<8x32xf32>
    %53 = arith.mulf %49, %20 : vector<8x32xf32>
    %54 = arith.mulf %48, %52 : vector<8x32xf32>
    %55 = arith.addf %53, %54 : vector<8x32xf32>
    %56 = math.tanh %55 : vector<8x32xf32>
    %57 = arith.mulf %50, %56 : vector<8x32xf32>
    %c0_28 = arith.constant 0 : index
    %c0_29 = arith.constant 0 : index
    %c0_30 = arith.constant 0 : index
    %58 = vector.load %arg9[%c0_28, %c0_29, %c0_30] : memref<8x8x32xf32, #tpu.memory_space<vmem>>, vector<1x8x32xf32>
    %59 = vector.shape_cast %58 : vector<1x8x32xf32> to vector<8x32xf32>
    %60 = vector.shape_cast %57 : vector<8x32xf32> to vector<1x8x32xf32>
    tpu.vector_store %arg9[%c0_28, %c0_29, %c0_30], %60 {strides = array<i32>} : memref<8x8x32xf32, #tpu.memory_space<vmem>>, vector<1x8x32xf32>,
    %61 = vector.extract_strided_slice %16 {offsets = [8, 0], sizes = [8, 128], strides = [1, 1]} : vector<64x128xf32> to vector<8x128xf32>
    %cst_31 = arith.constant dense<0.000000e+00> : vector<8x128xf32>
    %62 = tpu.matmul %38, %3, %cst_31 {dimension_numbers = #tpu.dot_dimension_numbers<[1], [0], [0], [1], [0, 0, 1, 1], [], []>} : vector<8x32xf32>, vector<32x128xf32>, vector<8x128xf32> -> vector<8x128xf32>
    %63 = arith.addf %61, %62 : vector<8x128xf32>
    %64 = arith.negf %63 : vector<8x128xf32>
    %65 = math.exp %64 : vector<8x128xf32>
    %cst_32 = arith.constant 1.000000e+00 : f32
    %66 = vector.broadcast %cst_32 : f32 to vector<8x128xf32>
    %67 = arith.addf %66, %65 : vector<8x128xf32>
    %68 = arith.divf %66, %67 : vector<8x128xf32>
    %69 = vector.extract_strided_slice %68 {offsets = [0, 0], sizes = [8, 32], strides = [1, 1]} : vector<8x128xf32> to vector<8x32xf32>
    %70 = vector.extract_strided_slice %68 {offsets = [0, 32], sizes = [8, 32], strides = [1, 1]} : vector<8x128xf32> to vector<8x32xf32>
    %71 = vector.extract_strided_slice %68 {offsets = [0, 96], sizes = [8, 32], strides = [1, 1]} : vector<8x128xf32> to vector<8x32xf32>
    %72 = vector.extract_strided_slice %63 {offsets = [0, 64], sizes = [8, 32], strides = [1, 1]} : vector<8x128xf32> to vector<8x32xf32>
    %73 = math.tanh %72 : vector<8x32xf32>
    %74 = arith.mulf %70, %36 : vector<8x32xf32>
    %75 = arith.mulf %69, %73 : vector<8x32xf32>
    %76 = arith.addf %74, %75 : vector<8x32xf32>
    %77 = math.tanh %76 : vector<8x32xf32>
    %78 = arith.mulf %71, %77 : vector<8x32xf32>
    %cst_33 = arith.constant dense<0.000000e+00> : vector<8x128xf32>
    %79 = tpu.matmul %78, %4, %cst_33 {dimension_numbers = #tpu.dot_dimension_numbers<[1], [0], [0], [1], [0, 0, 1, 1], [], []>} : vector<8x32xf32>, vector<32x128xf32>, vector<8x128xf32> -> vector<8x128xf32>
    %cst_34 = arith.constant dense<0.000000e+00> : vector<8x128xf32>
    %80 = tpu.matmul %57, %5, %cst_34 {dimension_numbers = #tpu.dot_dimension_numbers<[1], [0], [0], [1], [0, 0, 1, 1], [], []>} : vector<8x32xf32>, vector<32x128xf32>, vector<8x128xf32> -> vector<8x128xf32>
    %81 = arith.addf %79, %80 : vector<8x128xf32>
    %82 = arith.addf %81, %8 : vector<8x128xf32>
    %83 = arith.negf %82 : vector<8x128xf32>
    %84 = math.exp %83 : vector<8x128xf32>
    %cst_35 = arith.constant 1.000000e+00 : f32
    %85 = vector.broadcast %cst_35 : f32 to vector<8x128xf32>
    %86 = arith.addf %85, %84 : vector<8x128xf32>
    %87 = arith.divf %85, %86 : vector<8x128xf32>
    %88 = vector.extract_strided_slice %87 {offsets = [0, 0], sizes = [8, 32], strides = [1, 1]} : vector<8x128xf32> to vector<8x32xf32>
    %89 = vector.extract_strided_slice %87 {offsets = [0, 32], sizes = [8, 32], strides = [1, 1]} : vector<8x128xf32> to vector<8x32xf32>
    %90 = vector.extract_strided_slice %87 {offsets = [0, 96], sizes = [8, 32], strides = [1, 1]} : vector<8x128xf32> to vector<8x32xf32>
    %91 = vector.extract_strided_slice %82 {offsets = [0, 64], sizes = [8, 32], strides = [1, 1]} : vector<8x128xf32> to vector<8x32xf32>
    %92 = math.tanh %91 : vector<8x32xf32>
    %93 = arith.mulf %89, %55 : vector<8x32xf32>
    %94 = arith.mulf %88, %92 : vector<8x32xf32>
    %95 = arith.addf %93, %94 : vector<8x32xf32>
    %96 = math.tanh %95 : vector<8x32xf32>
    %97 = arith.mulf %90, %96 : vector<8x32xf32>
    %c1 = arith.constant 1 : index
    %c0_36 = arith.constant 0 : index
    %c0_37 = arith.constant 0 : index
    %98 = vector.load %arg9[%c1, %c0_36, %c0_37] : memref<8x8x32xf32, #tpu.memory_space<vmem>>, vector<1x8x32xf32>
    %99 = vector.shape_cast %98 : vector<1x8x32xf32> to vector<8x32xf32>
    %100 = vector.shape_cast %97 : vector<8x32xf32> to vector<1x8x32xf32>
    tpu.vector_store %arg9[%c1, %c0_36, %c0_37], %100 {strides = array<i32>} : memref<8x8x32xf32, #tpu.memory_space<vmem>>, vector<1x8x32xf32>,
    %101 = vector.extract_strided_slice %16 {offsets = [16, 0], sizes = [8, 128], strides = [1, 1]} : vector<64x128xf32> to vector<8x128xf32>
    %cst_38 = arith.constant dense<0.000000e+00> : vector<8x128xf32>
    %102 = tpu.matmul %78, %3, %cst_38 {dimension_numbers = #tpu.dot_dimension_numbers<[1], [0], [0], [1], [0, 0, 1, 1], [], []>} : vector<8x32xf32>, vector<32x128xf32>, vector<8x128xf32> -> vector<8x128xf32>
    %103 = arith.addf %101, %102 : vector<8x128xf32>
    %104 = arith.negf %103 : vector<8x128xf32>
    %105 = math.exp %104 : vector<8x128xf32>
    %cst_39 = arith.constant 1.000000e+00 : f32
    %106 = vector.broadcast %cst_39 : f32 to vector<8x128xf32>
    %107 = arith.addf %106, %105 : vector<8x128xf32>
    %108 = arith.divf %106, %107 : vector<8x128xf32>
    %109 = vector.extract_strided_slice %108 {offsets = [0, 0], sizes = [8, 32], strides = [1, 1]} : vector<8x128xf32> to vector<8x32xf32>
    %110 = vector.extract_strided_slice %108 {offsets = [0, 32], sizes = [8, 32], strides = [1, 1]} : vector<8x128xf32> to vector<8x32xf32>
    %111 = vector.extract_strided_slice %108 {offsets = [0, 96], sizes = [8, 32], strides = [1, 1]} : vector<8x128xf32> to vector<8x32xf32>
    %112 = vector.extract_strided_slice %103 {offsets = [0, 64], sizes = [8, 32], strides = [1, 1]} : vector<8x128xf32> to vector<8x32xf32>
    %113 = math.tanh %112 : vector<8x32xf32>
    %114 = arith.mulf %110, %76 : vector<8x32xf32>
    %115 = arith.mulf %109, %113 : vector<8x32xf32>
    %116 = arith.addf %114, %115 : vector<8x32xf32>
    %117 = math.tanh %116 : vector<8x32xf32>
    %118 = arith.mulf %111, %117 : vector<8x32xf32>
    %cst_40 = arith.constant dense<0.000000e+00> : vector<8x128xf32>
    %119 = tpu.matmul %118, %4, %cst_40 {dimension_numbers = #tpu.dot_dimension_numbers<[1], [0], [0], [1], [0, 0, 1, 1], [], []>} : vector<8x32xf32>, vector<32x128xf32>, vector<8x128xf32> -> vector<8x128xf32>
    %cst_41 = arith.constant dense<0.000000e+00> : vector<8x128xf32>
    %120 = tpu.matmul %97, %5, %cst_41 {dimension_numbers = #tpu.dot_dimension_numbers<[1], [0], [0], [1], [0, 0, 1, 1], [], []>} : vector<8x32xf32>, vector<32x128xf32>, vector<8x128xf32> -> vector<8x128xf32>
    %121 = arith.addf %119, %120 : vector<8x128xf32>
    %122 = arith.addf %121, %8 : vector<8x128xf32>
    %123 = arith.negf %122 : vector<8x128xf32>
    %124 = math.exp %123 : vector<8x128xf32>
    %cst_42 = arith.constant 1.000000e+00 : f32
    %125 = vector.broadcast %cst_42 : f32 to vector<8x128xf32>
    %126 = arith.addf %125, %124 : vector<8x128xf32>
    %127 = arith.divf %125, %126 : vector<8x128xf32>
    %128 = vector.extract_strided_slice %127 {offsets = [0, 0], sizes = [8, 32], strides = [1, 1]} : vector<8x128xf32> to vector<8x32xf32>
    %129 = vector.extract_strided_slice %127 {offsets = [0, 32], sizes = [8, 32], strides = [1, 1]} : vector<8x128xf32> to vector<8x32xf32>
    %130 = vector.extract_strided_slice %127 {offsets = [0, 96], sizes = [8, 32], strides = [1, 1]} : vector<8x128xf32> to vector<8x32xf32>
    %131 = vector.extract_strided_slice %122 {offsets = [0, 64], sizes = [8, 32], strides = [1, 1]} : vector<8x128xf32> to vector<8x32xf32>
    %132 = math.tanh %131 : vector<8x32xf32>
    %133 = arith.mulf %129, %95 : vector<8x32xf32>
    %134 = arith.mulf %128, %132 : vector<8x32xf32>
    %135 = arith.addf %133, %134 : vector<8x32xf32>
    %136 = math.tanh %135 : vector<8x32xf32>
    %137 = arith.mulf %130, %136 : vector<8x32xf32>
    %c2 = arith.constant 2 : index
    %c0_43 = arith.constant 0 : index
    %c0_44 = arith.constant 0 : index
    %138 = vector.load %arg9[%c2, %c0_43, %c0_44] : memref<8x8x32xf32, #tpu.memory_space<vmem>>, vector<1x8x32xf32>
    %139 = vector.shape_cast %138 : vector<1x8x32xf32> to vector<8x32xf32>
    %140 = vector.shape_cast %137 : vector<8x32xf32> to vector<1x8x32xf32>
    tpu.vector_store %arg9[%c2, %c0_43, %c0_44], %140 {strides = array<i32>} : memref<8x8x32xf32, #tpu.memory_space<vmem>>, vector<1x8x32xf32>,
    %141 = vector.extract_strided_slice %16 {offsets = [24, 0], sizes = [8, 128], strides = [1, 1]} : vector<64x128xf32> to vector<8x128xf32>
    %cst_45 = arith.constant dense<0.000000e+00> : vector<8x128xf32>
    %142 = tpu.matmul %118, %3, %cst_45 {dimension_numbers = #tpu.dot_dimension_numbers<[1], [0], [0], [1], [0, 0, 1, 1], [], []>} : vector<8x32xf32>, vector<32x128xf32>, vector<8x128xf32> -> vector<8x128xf32>
    %143 = arith.addf %141, %142 : vector<8x128xf32>
    %144 = arith.negf %143 : vector<8x128xf32>
    %145 = math.exp %144 : vector<8x128xf32>
    %cst_46 = arith.constant 1.000000e+00 : f32
    %146 = vector.broadcast %cst_46 : f32 to vector<8x128xf32>
    %147 = arith.addf %146, %145 : vector<8x128xf32>
    %148 = arith.divf %146, %147 : vector<8x128xf32>
    %149 = vector.extract_strided_slice %148 {offsets = [0, 0], sizes = [8, 32], strides = [1, 1]} : vector<8x128xf32> to vector<8x32xf32>
    %150 = vector.extract_strided_slice %148 {offsets = [0, 32], sizes = [8, 32], strides = [1, 1]} : vector<8x128xf32> to vector<8x32xf32>
    %151 = vector.extract_strided_slice %148 {offsets = [0, 96], sizes = [8, 32], strides = [1, 1]} : vector<8x128xf32> to vector<8x32xf32>
    %152 = vector.extract_strided_slice %143 {offsets = [0, 64], sizes = [8, 32], strides = [1, 1]} : vector<8x128xf32> to vector<8x32xf32>
    %153 = math.tanh %152 : vector<8x32xf32>
    %154 = arith.mulf %150, %116 : vector<8x32xf32>
    %155 = arith.mulf %149, %153 : vector<8x32xf32>
    %156 = arith.addf %154, %155 : vector<8x32xf32>
    %157 = math.tanh %156 : vector<8x32xf32>
    %158 = arith.mulf %151, %157 : vector<8x32xf32>
    %cst_47 = arith.constant dense<0.000000e+00> : vector<8x128xf32>
    %159 = tpu.matmul %158, %4, %cst_47 {dimension_numbers = #tpu.dot_dimension_numbers<[1], [0], [0], [1], [0, 0, 1, 1], [], []>} : vector<8x32xf32>, vector<32x128xf32>, vector<8x128xf32> -> vector<8x128xf32>
    %cst_48 = arith.constant dense<0.000000e+00> : vector<8x128xf32>
    %160 = tpu.matmul %137, %5, %cst_48 {dimension_numbers = #tpu.dot_dimension_numbers<[1], [0], [0], [1], [0, 0, 1, 1], [], []>} : vector<8x32xf32>, vector<32x128xf32>, vector<8x128xf32> -> vector<8x128xf32>
    %161 = arith.addf %159, %160 : vector<8x128xf32>
    %162 = arith.addf %161, %8 : vector<8x128xf32>
    %163 = arith.negf %162 : vector<8x128xf32>
    %164 = math.exp %163 : vector<8x128xf32>
    %cst_49 = arith.constant 1.000000e+00 : f32
    %165 = vector.broadcast %cst_49 : f32 to vector<8x128xf32>
    %166 = arith.addf %165, %164 : vector<8x128xf32>
    %167 = arith.divf %165, %166 : vector<8x128xf32>
    %168 = vector.extract_strided_slice %167 {offsets = [0, 0], sizes = [8, 32], strides = [1, 1]} : vector<8x128xf32> to vector<8x32xf32>
    %169 = vector.extract_strided_slice %167 {offsets = [0, 32], sizes = [8, 32], strides = [1, 1]} : vector<8x128xf32> to vector<8x32xf32>
    %170 = vector.extract_strided_slice %167 {offsets = [0, 96], sizes = [8, 32], strides = [1, 1]} : vector<8x128xf32> to vector<8x32xf32>
    %171 = vector.extract_strided_slice %162 {offsets = [0, 64], sizes = [8, 32], strides = [1, 1]} : vector<8x128xf32> to vector<8x32xf32>
    %172 = math.tanh %171 : vector<8x32xf32>
    %173 = arith.mulf %169, %135 : vector<8x32xf32>
    %174 = arith.mulf %168, %172 : vector<8x32xf32>
    %175 = arith.addf %173, %174 : vector<8x32xf32>
    %176 = math.tanh %175 : vector<8x32xf32>
    %177 = arith.mulf %170, %176 : vector<8x32xf32>
    %c3 = arith.constant 3 : index
    %c0_50 = arith.constant 0 : index
    %c0_51 = arith.constant 0 : index
    %178 = vector.load %arg9[%c3, %c0_50, %c0_51] : memref<8x8x32xf32, #tpu.memory_space<vmem>>, vector<1x8x32xf32>
    %179 = vector.shape_cast %178 : vector<1x8x32xf32> to vector<8x32xf32>
    %180 = vector.shape_cast %177 : vector<8x32xf32> to vector<1x8x32xf32>
    tpu.vector_store %arg9[%c3, %c0_50, %c0_51], %180 {strides = array<i32>} : memref<8x8x32xf32, #tpu.memory_space<vmem>>, vector<1x8x32xf32>,
    %181 = vector.extract_strided_slice %16 {offsets = [32, 0], sizes = [8, 128], strides = [1, 1]} : vector<64x128xf32> to vector<8x128xf32>
    %cst_52 = arith.constant dense<0.000000e+00> : vector<8x128xf32>
    %182 = tpu.matmul %158, %3, %cst_52 {dimension_numbers = #tpu.dot_dimension_numbers<[1], [0], [0], [1], [0, 0, 1, 1], [], []>} : vector<8x32xf32>, vector<32x128xf32>, vector<8x128xf32> -> vector<8x128xf32>
    %183 = arith.addf %181, %182 : vector<8x128xf32>
    %184 = arith.negf %183 : vector<8x128xf32>
    %185 = math.exp %184 : vector<8x128xf32>
    %cst_53 = arith.constant 1.000000e+00 : f32
    %186 = vector.broadcast %cst_53 : f32 to vector<8x128xf32>
    %187 = arith.addf %186, %185 : vector<8x128xf32>
    %188 = arith.divf %186, %187 : vector<8x128xf32>
    %189 = vector.extract_strided_slice %188 {offsets = [0, 0], sizes = [8, 32], strides = [1, 1]} : vector<8x128xf32> to vector<8x32xf32>
    %190 = vector.extract_strided_slice %188 {offsets = [0, 32], sizes = [8, 32], strides = [1, 1]} : vector<8x128xf32> to vector<8x32xf32>
    %191 = vector.extract_strided_slice %188 {offsets = [0, 96], sizes = [8, 32], strides = [1, 1]} : vector<8x128xf32> to vector<8x32xf32>
    %192 = vector.extract_strided_slice %183 {offsets = [0, 64], sizes = [8, 32], strides = [1, 1]} : vector<8x128xf32> to vector<8x32xf32>
    %193 = math.tanh %192 : vector<8x32xf32>
    %194 = arith.mulf %190, %156 : vector<8x32xf32>
    %195 = arith.mulf %189, %193 : vector<8x32xf32>
    %196 = arith.addf %194, %195 : vector<8x32xf32>
    %197 = math.tanh %196 : vector<8x32xf32>
    %198 = arith.mulf %191, %197 : vector<8x32xf32>
    %cst_54 = arith.constant dense<0.000000e+00> : vector<8x128xf32>
    %199 = tpu.matmul %198, %4, %cst_54 {dimension_numbers = #tpu.dot_dimension_numbers<[1], [0], [0], [1], [0, 0, 1, 1], [], []>} : vector<8x32xf32>, vector<32x128xf32>, vector<8x128xf32> -> vector<8x128xf32>
    %cst_55 = arith.constant dense<0.000000e+00> : vector<8x128xf32>
    %200 = tpu.matmul %177, %5, %cst_55 {dimension_numbers = #tpu.dot_dimension_numbers<[1], [0], [0], [1], [0, 0, 1, 1], [], []>} : vector<8x32xf32>, vector<32x128xf32>, vector<8x128xf32> -> vector<8x128xf32>
    %201 = arith.addf %199, %200 : vector<8x128xf32>
    %202 = arith.addf %201, %8 : vector<8x128xf32>
    %203 = arith.negf %202 : vector<8x128xf32>
    %204 = math.exp %203 : vector<8x128xf32>
    %cst_56 = arith.constant 1.000000e+00 : f32
    %205 = vector.broadcast %cst_56 : f32 to vector<8x128xf32>
    %206 = arith.addf %205, %204 : vector<8x128xf32>
    %207 = arith.divf %205, %206 : vector<8x128xf32>
    %208 = vector.extract_strided_slice %207 {offsets = [0, 0], sizes = [8, 32], strides = [1, 1]} : vector<8x128xf32> to vector<8x32xf32>
    %209 = vector.extract_strided_slice %207 {offsets = [0, 32], sizes = [8, 32], strides = [1, 1]} : vector<8x128xf32> to vector<8x32xf32>
    %210 = vector.extract_strided_slice %207 {offsets = [0, 96], sizes = [8, 32], strides = [1, 1]} : vector<8x128xf32> to vector<8x32xf32>
    %211 = vector.extract_strided_slice %202 {offsets = [0, 64], sizes = [8, 32], strides = [1, 1]} : vector<8x128xf32> to vector<8x32xf32>
    %212 = math.tanh %211 : vector<8x32xf32>
    %213 = arith.mulf %209, %175 : vector<8x32xf32>
    %214 = arith.mulf %208, %212 : vector<8x32xf32>
    %215 = arith.addf %213, %214 : vector<8x32xf32>
    %216 = math.tanh %215 : vector<8x32xf32>
    %217 = arith.mulf %210, %216 : vector<8x32xf32>
    %c4 = arith.constant 4 : index
    %c0_57 = arith.constant 0 : index
    %c0_58 = arith.constant 0 : index
    %218 = vector.load %arg9[%c4, %c0_57, %c0_58] : memref<8x8x32xf32, #tpu.memory_space<vmem>>, vector<1x8x32xf32>
    %219 = vector.shape_cast %218 : vector<1x8x32xf32> to vector<8x32xf32>
    %220 = vector.shape_cast %217 : vector<8x32xf32> to vector<1x8x32xf32>
    tpu.vector_store %arg9[%c4, %c0_57, %c0_58], %220 {strides = array<i32>} : memref<8x8x32xf32, #tpu.memory_space<vmem>>, vector<1x8x32xf32>,
    %221 = vector.extract_strided_slice %16 {offsets = [40, 0], sizes = [8, 128], strides = [1, 1]} : vector<64x128xf32> to vector<8x128xf32>
    %cst_59 = arith.constant dense<0.000000e+00> : vector<8x128xf32>
    %222 = tpu.matmul %198, %3, %cst_59 {dimension_numbers = #tpu.dot_dimension_numbers<[1], [0], [0], [1], [0, 0, 1, 1], [], []>} : vector<8x32xf32>, vector<32x128xf32>, vector<8x128xf32> -> vector<8x128xf32>
    %223 = arith.addf %221, %222 : vector<8x128xf32>
    %224 = arith.negf %223 : vector<8x128xf32>
    %225 = math.exp %224 : vector<8x128xf32>
    %cst_60 = arith.constant 1.000000e+00 : f32
    %226 = vector.broadcast %cst_60 : f32 to vector<8x128xf32>
    %227 = arith.addf %226, %225 : vector<8x128xf32>
    %228 = arith.divf %226, %227 : vector<8x128xf32>
    %229 = vector.extract_strided_slice %228 {offsets = [0, 0], sizes = [8, 32], strides = [1, 1]} : vector<8x128xf32> to vector<8x32xf32>
    %230 = vector.extract_strided_slice %228 {offsets = [0, 32], sizes = [8, 32], strides = [1, 1]} : vector<8x128xf32> to vector<8x32xf32>
    %231 = vector.extract_strided_slice %228 {offsets = [0, 96], sizes = [8, 32], strides = [1, 1]} : vector<8x128xf32> to vector<8x32xf32>
    %232 = vector.extract_strided_slice %223 {offsets = [0, 64], sizes = [8, 32], strides = [1, 1]} : vector<8x128xf32> to vector<8x32xf32>
    %233 = math.tanh %232 : vector<8x32xf32>
    %234 = arith.mulf %230, %196 : vector<8x32xf32>
    %235 = arith.mulf %229, %233 : vector<8x32xf32>
    %236 = arith.addf %234, %235 : vector<8x32xf32>
    %237 = math.tanh %236 : vector<8x32xf32>
    %238 = arith.mulf %231, %237 : vector<8x32xf32>
    %cst_61 = arith.constant dense<0.000000e+00> : vector<8x128xf32>
    %239 = tpu.matmul %238, %4, %cst_61 {dimension_numbers = #tpu.dot_dimension_numbers<[1], [0], [0], [1], [0, 0, 1, 1], [], []>} : vector<8x32xf32>, vector<32x128xf32>, vector<8x128xf32> -> vector<8x128xf32>
    %cst_62 = arith.constant dense<0.000000e+00> : vector<8x128xf32>
    %240 = tpu.matmul %217, %5, %cst_62 {dimension_numbers = #tpu.dot_dimension_numbers<[1], [0], [0], [1], [0, 0, 1, 1], [], []>} : vector<8x32xf32>, vector<32x128xf32>, vector<8x128xf32> -> vector<8x128xf32>
    %241 = arith.addf %239, %240 : vector<8x128xf32>
    %242 = arith.addf %241, %8 : vector<8x128xf32>
    %243 = arith.negf %242 : vector<8x128xf32>
    %244 = math.exp %243 : vector<8x128xf32>
    %cst_63 = arith.constant 1.000000e+00 : f32
    %245 = vector.broadcast %cst_63 : f32 to vector<8x128xf32>
    %246 = arith.addf %245, %244 : vector<8x128xf32>
    %247 = arith.divf %245, %246 : vector<8x128xf32>
    %248 = vector.extract_strided_slice %247 {offsets = [0, 0], sizes = [8, 32], strides = [1, 1]} : vector<8x128xf32> to vector<8x32xf32>
    %249 = vector.extract_strided_slice %247 {offsets = [0, 32], sizes = [8, 32], strides = [1, 1]} : vector<8x128xf32> to vector<8x32xf32>
    %250 = vector.extract_strided_slice %247 {offsets = [0, 96], sizes = [8, 32], strides = [1, 1]} : vector<8x128xf32> to vector<8x32xf32>
    %251 = vector.extract_strided_slice %242 {offsets = [0, 64], sizes = [8, 32], strides = [1, 1]} : vector<8x128xf32> to vector<8x32xf32>
    %252 = math.tanh %251 : vector<8x32xf32>
    %253 = arith.mulf %249, %215 : vector<8x32xf32>
    %254 = arith.mulf %248, %252 : vector<8x32xf32>
    %255 = arith.addf %253, %254 : vector<8x32xf32>
    %256 = math.tanh %255 : vector<8x32xf32>
    %257 = arith.mulf %250, %256 : vector<8x32xf32>
    %c5 = arith.constant 5 : index
    %c0_64 = arith.constant 0 : index
    %c0_65 = arith.constant 0 : index
    %258 = vector.load %arg9[%c5, %c0_64, %c0_65] : memref<8x8x32xf32, #tpu.memory_space<vmem>>, vector<1x8x32xf32>
    %259 = vector.shape_cast %258 : vector<1x8x32xf32> to vector<8x32xf32>
    %260 = vector.shape_cast %257 : vector<8x32xf32> to vector<1x8x32xf32>
    tpu.vector_store %arg9[%c5, %c0_64, %c0_65], %260 {strides = array<i32>} : memref<8x8x32xf32, #tpu.memory_space<vmem>>, vector<1x8x32xf32>,
    %261 = vector.extract_strided_slice %16 {offsets = [48, 0], sizes = [8, 128], strides = [1, 1]} : vector<64x128xf32> to vector<8x128xf32>
    %cst_66 = arith.constant dense<0.000000e+00> : vector<8x128xf32>
    %262 = tpu.matmul %238, %3, %cst_66 {dimension_numbers = #tpu.dot_dimension_numbers<[1], [0], [0], [1], [0, 0, 1, 1], [], []>} : vector<8x32xf32>, vector<32x128xf32>, vector<8x128xf32> -> vector<8x128xf32>
    %263 = arith.addf %261, %262 : vector<8x128xf32>
    %264 = arith.negf %263 : vector<8x128xf32>
    %265 = math.exp %264 : vector<8x128xf32>
    %cst_67 = arith.constant 1.000000e+00 : f32
    %266 = vector.broadcast %cst_67 : f32 to vector<8x128xf32>
    %267 = arith.addf %266, %265 : vector<8x128xf32>
    %268 = arith.divf %266, %267 : vector<8x128xf32>
    %269 = vector.extract_strided_slice %268 {offsets = [0, 0], sizes = [8, 32], strides = [1, 1]} : vector<8x128xf32> to vector<8x32xf32>
    %270 = vector.extract_strided_slice %268 {offsets = [0, 32], sizes = [8, 32], strides = [1, 1]} : vector<8x128xf32> to vector<8x32xf32>
    %271 = vector.extract_strided_slice %268 {offsets = [0, 96], sizes = [8, 32], strides = [1, 1]} : vector<8x128xf32> to vector<8x32xf32>
    %272 = vector.extract_strided_slice %263 {offsets = [0, 64], sizes = [8, 32], strides = [1, 1]} : vector<8x128xf32> to vector<8x32xf32>
    %273 = math.tanh %272 : vector<8x32xf32>
    %274 = arith.mulf %270, %236 : vector<8x32xf32>
    %275 = arith.mulf %269, %273 : vector<8x32xf32>
    %276 = arith.addf %274, %275 : vector<8x32xf32>
    %277 = math.tanh %276 : vector<8x32xf32>
    %278 = arith.mulf %271, %277 : vector<8x32xf32>
    %cst_68 = arith.constant dense<0.000000e+00> : vector<8x128xf32>
    %279 = tpu.matmul %278, %4, %cst_68 {dimension_numbers = #tpu.dot_dimension_numbers<[1], [0], [0], [1], [0, 0, 1, 1], [], []>} : vector<8x32xf32>, vector<32x128xf32>, vector<8x128xf32> -> vector<8x128xf32>
    %cst_69 = arith.constant dense<0.000000e+00> : vector<8x128xf32>
    %280 = tpu.matmul %257, %5, %cst_69 {dimension_numbers = #tpu.dot_dimension_numbers<[1], [0], [0], [1], [0, 0, 1, 1], [], []>} : vector<8x32xf32>, vector<32x128xf32>, vector<8x128xf32> -> vector<8x128xf32>
    %281 = arith.addf %279, %280 : vector<8x128xf32>
    %282 = arith.addf %281, %8 : vector<8x128xf32>
    %283 = arith.negf %282 : vector<8x128xf32>
    %284 = math.exp %283 : vector<8x128xf32>
    %cst_70 = arith.constant 1.000000e+00 : f32
    %285 = vector.broadcast %cst_70 : f32 to vector<8x128xf32>
    %286 = arith.addf %285, %284 : vector<8x128xf32>
    %287 = arith.divf %285, %286 : vector<8x128xf32>
    %288 = vector.extract_strided_slice %287 {offsets = [0, 0], sizes = [8, 32], strides = [1, 1]} : vector<8x128xf32> to vector<8x32xf32>
    %289 = vector.extract_strided_slice %287 {offsets = [0, 32], sizes = [8, 32], strides = [1, 1]} : vector<8x128xf32> to vector<8x32xf32>
    %290 = vector.extract_strided_slice %287 {offsets = [0, 96], sizes = [8, 32], strides = [1, 1]} : vector<8x128xf32> to vector<8x32xf32>
    %291 = vector.extract_strided_slice %282 {offsets = [0, 64], sizes = [8, 32], strides = [1, 1]} : vector<8x128xf32> to vector<8x32xf32>
    %292 = math.tanh %291 : vector<8x32xf32>
    %293 = arith.mulf %289, %255 : vector<8x32xf32>
    %294 = arith.mulf %288, %292 : vector<8x32xf32>
    %295 = arith.addf %293, %294 : vector<8x32xf32>
    %296 = math.tanh %295 : vector<8x32xf32>
    %297 = arith.mulf %290, %296 : vector<8x32xf32>
    %c6 = arith.constant 6 : index
    %c0_71 = arith.constant 0 : index
    %c0_72 = arith.constant 0 : index
    %298 = vector.load %arg9[%c6, %c0_71, %c0_72] : memref<8x8x32xf32, #tpu.memory_space<vmem>>, vector<1x8x32xf32>
    %299 = vector.shape_cast %298 : vector<1x8x32xf32> to vector<8x32xf32>
    %300 = vector.shape_cast %297 : vector<8x32xf32> to vector<1x8x32xf32>
    tpu.vector_store %arg9[%c6, %c0_71, %c0_72], %300 {strides = array<i32>} : memref<8x8x32xf32, #tpu.memory_space<vmem>>, vector<1x8x32xf32>,
    %301 = vector.extract_strided_slice %16 {offsets = [56, 0], sizes = [8, 128], strides = [1, 1]} : vector<64x128xf32> to vector<8x128xf32>
    %cst_73 = arith.constant dense<0.000000e+00> : vector<8x128xf32>
    %302 = tpu.matmul %278, %3, %cst_73 {dimension_numbers = #tpu.dot_dimension_numbers<[1], [0], [0], [1], [0, 0, 1, 1], [], []>} : vector<8x32xf32>, vector<32x128xf32>, vector<8x128xf32> -> vector<8x128xf32>
    %303 = arith.addf %301, %302 : vector<8x128xf32>
    %304 = arith.negf %303 : vector<8x128xf32>
    %305 = math.exp %304 : vector<8x128xf32>
    %cst_74 = arith.constant 1.000000e+00 : f32
    %306 = vector.broadcast %cst_74 : f32 to vector<8x128xf32>
    %307 = arith.addf %306, %305 : vector<8x128xf32>
    %308 = arith.divf %306, %307 : vector<8x128xf32>
    %309 = vector.extract_strided_slice %308 {offsets = [0, 0], sizes = [8, 32], strides = [1, 1]} : vector<8x128xf32> to vector<8x32xf32>
    %310 = vector.extract_strided_slice %308 {offsets = [0, 32], sizes = [8, 32], strides = [1, 1]} : vector<8x128xf32> to vector<8x32xf32>
    %311 = vector.extract_strided_slice %308 {offsets = [0, 96], sizes = [8, 32], strides = [1, 1]} : vector<8x128xf32> to vector<8x32xf32>
    %312 = vector.extract_strided_slice %303 {offsets = [0, 64], sizes = [8, 32], strides = [1, 1]} : vector<8x128xf32> to vector<8x32xf32>
    %313 = math.tanh %312 : vector<8x32xf32>
    %314 = arith.mulf %310, %276 : vector<8x32xf32>
    %315 = arith.mulf %309, %313 : vector<8x32xf32>
    %316 = arith.addf %314, %315 : vector<8x32xf32>
    %317 = math.tanh %316 : vector<8x32xf32>
    %318 = arith.mulf %311, %317 : vector<8x32xf32>
    %cst_75 = arith.constant dense<0.000000e+00> : vector<8x128xf32>
    %319 = tpu.matmul %318, %4, %cst_75 {dimension_numbers = #tpu.dot_dimension_numbers<[1], [0], [0], [1], [0, 0, 1, 1], [], []>} : vector<8x32xf32>, vector<32x128xf32>, vector<8x128xf32> -> vector<8x128xf32>
    %cst_76 = arith.constant dense<0.000000e+00> : vector<8x128xf32>
    %320 = tpu.matmul %297, %5, %cst_76 {dimension_numbers = #tpu.dot_dimension_numbers<[1], [0], [0], [1], [0, 0, 1, 1], [], []>} : vector<8x32xf32>, vector<32x128xf32>, vector<8x128xf32> -> vector<8x128xf32>
    %321 = arith.addf %319, %320 : vector<8x128xf32>
    %322 = arith.addf %321, %8 : vector<8x128xf32>
    %323 = arith.negf %322 : vector<8x128xf32>
    %324 = math.exp %323 : vector<8x128xf32>
    %cst_77 = arith.constant 1.000000e+00 : f32
    %325 = vector.broadcast %cst_77 : f32 to vector<8x128xf32>
    %326 = arith.addf %325, %324 : vector<8x128xf32>
    %327 = arith.divf %325, %326 : vector<8x128xf32>
    %328 = vector.extract_strided_slice %327 {offsets = [0, 0], sizes = [8, 32], strides = [1, 1]} : vector<8x128xf32> to vector<8x32xf32>
    %329 = vector.extract_strided_slice %327 {offsets = [0, 32], sizes = [8, 32], strides = [1, 1]} : vector<8x128xf32> to vector<8x32xf32>
    %330 = vector.extract_strided_slice %327 {offsets = [0, 96], sizes = [8, 32], strides = [1, 1]} : vector<8x128xf32> to vector<8x32xf32>
    %331 = vector.extract_strided_slice %322 {offsets = [0, 64], sizes = [8, 32], strides = [1, 1]} : vector<8x128xf32> to vector<8x32xf32>
    %332 = math.tanh %331 : vector<8x32xf32>
    %333 = arith.mulf %329, %295 : vector<8x32xf32>
    %334 = arith.mulf %328, %332 : vector<8x32xf32>
    %335 = arith.addf %333, %334 : vector<8x32xf32>
    %336 = math.tanh %335 : vector<8x32xf32>
    %337 = arith.mulf %330, %336 : vector<8x32xf32>
    %c7 = arith.constant 7 : index
    %c0_78 = arith.constant 0 : index
    %c0_79 = arith.constant 0 : index
    %338 = vector.load %arg9[%c7, %c0_78, %c0_79] : memref<8x8x32xf32, #tpu.memory_space<vmem>>, vector<1x8x32xf32>
    %339 = vector.shape_cast %338 : vector<1x8x32xf32> to vector<8x32xf32>
    %340 = vector.shape_cast %337 : vector<8x32xf32> to vector<1x8x32xf32>
    tpu.vector_store %arg9[%c7, %c0_78, %c0_79], %340 {strides = array<i32>} : memref<8x8x32xf32, #tpu.memory_space<vmem>>, vector<1x8x32xf32>,
    %c0_80 = arith.constant 0 : index
    %c0_81 = arith.constant 0 : index
    %341 = vector.load %arg10[%c0_80, %c0_81] : memref<8x32xf32, #tpu.memory_space<vmem>>, vector<8x32xf32>
    tpu.vector_store %arg10[%c0_80, %c0_81], %318 {strides = array<i32>} : memref<8x32xf32, #tpu.memory_space<vmem>>, vector<8x32xf32>,
    %c0_82 = arith.constant 0 : index
    %c0_83 = arith.constant 0 : index
    %342 = vector.load %arg11[%c0_82, %c0_83] : memref<8x32xf32, #tpu.memory_space<vmem>>, vector<8x32xf32>
    tpu.vector_store %arg11[%c0_82, %c0_83], %316 {strides = array<i32>} : memref<8x32xf32, #tpu.memory_space<vmem>>, vector<8x32xf32>,
    %c0_84 = arith.constant 0 : index
    %c0_85 = arith.constant 0 : index
    %343 = vector.load %arg12[%c0_84, %c0_85] : memref<8x32xf32, #tpu.memory_space<vmem>>, vector<8x32xf32>
    tpu.vector_store %arg12[%c0_84, %c0_85], %337 {strides = array<i32>} : memref<8x32xf32, #tpu.memory_space<vmem>>, vector<8x32xf32>,
    %c0_86 = arith.constant 0 : index
    %c0_87 = arith.constant 0 : index
    %344 = vector.load %arg13[%c0_86, %c0_87] : memref<8x32xf32, #tpu.memory_space<vmem>>, vector<8x32xf32>
    tpu.vector_store %arg13[%c0_86, %c0_87], %335 {strides = array<i32>} : memref<8x32xf32, #tpu.memory_space<vmem>>, vector<8x32xf32>,
    return
  }
  func.func @transform_0(%arg0: i32, %arg1: i32) -> (i32, i32, i32) {
    %c0_i32 = arith.constant 0 : i32
    %c0_i32_0 = arith.constant 0 : i32
    return %arg1, %arg0, %c0_i32 : i32, i32, i32
  }
  func.func @transform_1(%arg0: i32, %arg1: i32) -> (i32, i32) {
    %c0_i32 = arith.constant 0 : i32
    %c0_i32_0 = arith.constant 0 : i32
    %c0_i32_1 = arith.constant 0 : i32
    return %c0_i32, %c0_i32_0 : i32, i32
  }
  func.func @transform_2(%arg0: i32, %arg1: i32) -> (i32, i32) {
    %c0_i32 = arith.constant 0 : i32
    %c0_i32_0 = arith.constant 0 : i32
    %c0_i32_1 = arith.constant 0 : i32
    return %c0_i32, %c0_i32_0 : i32, i32
  }
  func.func @transform_3(%arg0: i32, %arg1: i32) -> (i32, i32) {
    %c0_i32 = arith.constant 0 : i32
    %c0_i32_0 = arith.constant 0 : i32
    %c0_i32_1 = arith.constant 0 : i32
    return %c0_i32, %c0_i32_0 : i32, i32
  }
  func.func @transform_4(%arg0: i32, %arg1: i32) -> (i32, i32) {
    %c0_i32 = arith.constant 0 : i32
    %c0_i32_0 = arith.constant 0 : i32
    %c0_i32_1 = arith.constant 0 : i32
    return %c0_i32, %c0_i32_0 : i32, i32
  }
  func.func @transform_5(%arg0: i32, %arg1: i32) -> (i32, i32) {
    %c0_i32 = arith.constant 0 : i32
    %c0_i32_0 = arith.constant 0 : i32
    %c0_i32_1 = arith.constant 0 : i32
    return %c0_i32, %c0_i32_0 : i32, i32
  }
  func.func @transform_6(%arg0: i32, %arg1: i32) -> (i32, i32) {
    %c0_i32 = arith.constant 0 : i32
    %c0_i32_0 = arith.constant 0 : i32
    %c0_i32_1 = arith.constant 0 : i32
    return %c0_i32, %c0_i32_0 : i32, i32
  }
  func.func @transform_7(%arg0: i32, %arg1: i32) -> (i32, i32, i32) {
    %c0_i32 = arith.constant 0 : i32
    %c0_i32_0 = arith.constant 0 : i32
    return %arg1, %arg0, %c0_i32 : i32, i32, i32
  }
}

</mosaic_0001>

<llo_original>
// kernel: tpu_custom_call.1
$region0: #{tpu_custom_call.1}
  #allocation0 [shape = 'u32[]', space=smem, size = 0x4, offset = 0x4, fixed_abs, tag = 'smem constant byte address 0x4 - core index']
  #allocation1 [shape = 'u32[72,128]{1,0:T(1,128)}', space=vmem, size = 0x9000, scoped, tag = 'internal scratch']
  #allocation2 [shape = 'f32[8,32]{1,0:T(8,128)}', space=vmem, size = 0x1000, scoped, tag = 'scratch operand']
  #allocation3 [shape = 'f32[8,32]{1,0:T(8,128)}', space=vmem, size = 0x1000, scoped, tag = 'scratch operand']
  #allocation4 [shape = 'f32[8,32]{1,0:T(8,128)}', space=vmem, size = 0x1000, scoped, tag = 'scratch operand']
  #allocation5 [shape = 'f32[8,32]{1,0:T(8,128)}', space=vmem, size = 0x1000, scoped, tag = 'scratch operand']
  %s0 = inlined_call_operand.hbm [shape: f32[8,8,16], index: 0, kind: input, shape index: {}]
  %s1 = inlined_call_operand.hbm [shape: f32[16,128], index: 1, kind: input, shape index: {}]
  %s2 = inlined_call_operand.hbm [shape: f32[32,128], index: 2, kind: input, shape index: {}]
  %s3 = inlined_call_operand.vmem [shape: f32[1,128], index: 3, kind: input, shape index: {}]
  %s4 = inlined_call_operand.hbm [shape: f32[32,128], index: 4, kind: input, shape index: {}]
  %s5 = inlined_call_operand.hbm [shape: f32[32,128], index: 5, kind: input, shape index: {}]
  %s6 = inlined_call_operand.vmem [shape: f32[1,128], index: 6, kind: input, shape index: {}]
  %s7 = inlined_call_operand.hbm [shape: f32[8,8,32], index: 7, kind: output, shape index: {}]
  %s8 = sld [smem:[#allocation0]]
  $region62: #{tpu_custom_call.1} parent=0
    _
  %s10 = ssub.s32 1, %s8
  %s11 = scalar_select 0, %s10, %s8
  $region1: #{tpu_custom_call.1} parent=0
    #allocation6 [shape = 'u8[32768]{0}', space=vmem, size = 0x8000, scoped, tag = 'input window, operand 0, single buffered']
    #allocation7 [shape = 's32[1]{0}', space=sflag, size = 0x4, scoped, tag = 'scoped memory for tpu_custom_call.1']
    #allocation8 [shape = 's32[1]{0}', space=sflag, size = 0x4, scoped, tag = 'scoped memory for tpu_custom_call.1']
    #allocation9 [shape = 'u8[8192]{0}', space=vmem, size = 0x2000, scoped, tag = 'input window, operand 1, single buffered']
    #allocation10 [shape = 's32[1]{0}', space=sflag, size = 0x4, scoped, tag = 'scoped memory for tpu_custom_call.1']
    #allocation11 [shape = 'u8[16384]{0}', space=vmem, size = 0x4000, scoped, tag = 'input window, operand 2, single buffered']
    #allocation12 [shape = 'u8[16384]{0}', space=vmem, size = 0x4000, scoped, tag = 'input window, operand 4, single buffered']
    #allocation13 [shape = 's32[1]{0}', space=sflag, size = 0x4, scoped, tag = 'scoped memory for tpu_custom_call.1']
    #allocation14 [shape = 'u8[16384]{0}', space=vmem, size = 0x4000, scoped, tag = 'input window, operand 5, single buffered']
    #allocation15 [shape = 'u8[32768]{0}', space=vmem, size = 0x8000, scoped, tag = 'output window, operand 0, single buffered']
    %12 = vsyncpa [#allocation7], 0
    %13 = vsyncpa [#allocation10], 0
    %14 = vsyncpa [#allocation13], 0
    %15 = vsyncpa [#allocation8], 0
    // Predicated region
    $region2: #{tpu_custom_call.1} parent=1 // pred_check
      _
    $region3: #{tpu_custom_call.1} parent=1 // pred_check_branch
      %17 = sbr.rel (0) target = $region5
    $region4: #{tpu_custom_call.1} parent=1 // pred_region
      %19 = vsyncadd [#allocation7], 0
      %s20 = sshll.u32 %s0, 4
      %s21 = int_to_ptr.hbm [resolvable:$true] %s20
      %s22 = sshll.u32 [#allocation6], 4
      %s23 = int_to_ptr.vmem [resolvable:$true] %s22
      %28 = dma.hbm_to_vmem [thread:$0]  %s21, 1024, %s23, [#allocation7], 128, 128, 8
    $region5: #{tpu_custom_call.1} parent=1 // pred_fallthru
      _
    // Predicated region
    $region6: #{tpu_custom_call.1} parent=1 // pred_check
      _
    $region7: #{tpu_custom_call.1} parent=1 // pred_check_branch
      %30 = sbr.rel (0) target = $region9
    $region8: #{tpu_custom_call.1} parent=1 // pred_region
      %32 = vsyncadd [#allocation10], 0
      %s33 = sshll.u32 %s1, 4
      %s34 = int_to_ptr.hbm [resolvable:$true] %s33
      %s35 = sshll.u32 [#allocation9], 4
      %s36 = int_to_ptr.vmem [resolvable:$true] %s35
      %41 = dma.hbm_to_vmem [thread:$0]  %s34, 256, %s36, [#allocation10], 128, 128, 8
    $region9: #{tpu_custom_call.1} parent=1 // pred_fallthru
      _
    // Predicated region
    $region10: #{tpu_custom_call.1} parent=1 // pred_check
      _
    $region11: #{tpu_custom_call.1} parent=1 // pred_check_branch
      %43 = sbr.rel (0) target = $region13
    $region12: #{tpu_custom_call.1} parent=1 // pred_region
      %45 = vsyncadd [#allocation10], 0
      %s46 = sshll.u32 %s2, 4
      %s47 = int_to_ptr.hbm [resolvable:$true] %s46
      %s48 = sshll.u32 [#allocation11], 4
      %s49 = int_to_ptr.vmem [resolvable:$true] %s48
      %54 = dma.hbm_to_vmem [thread:$0]  %s47, 512, %s49, [#allocation10], 128, 128, 8
    $region13: #{tpu_custom_call.1} parent=1 // pred_fallthru
      _
    // Predicated region
    $region14: #{tpu_custom_call.1} parent=1 // pred_check
      _
    $region15: #{tpu_custom_call.1} parent=1 // pred_check_branch
      %56 = sbr.rel (0) target = $region17
    $region16: #{tpu_custom_call.1} parent=1 // pred_region
      _
    $region17: #{tpu_custom_call.1} parent=1 // pred_fallthru
      _
    // Predicated region
    $region18: #{tpu_custom_call.1} parent=1 // pred_check
      _
    $region19: #{tpu_custom_call.1} parent=1 // pred_check_branch
      %58 = sbr.rel (0) target = $region21
    $region20: #{tpu_custom_call.1} parent=1 // pred_region
      %60 = vsyncadd [#allocation13], 0
      %s61 = sshll.u32 %s4, 4
      %s62 = int_to_ptr.hbm [resolvable:$true] %s61
      %s63 = sshll.u32 [#allocation12], 4
      %s64 = int_to_ptr.vmem [resolvable:$true] %s63
      %69 = dma.hbm_to_vmem [thread:$0]  %s62, 512, %s64, [#allocation13], 128, 128, 8
    $region21: #{tpu_custom_call.1} parent=1 // pred_fallthru
      _
    // Predicated region
    $region22: #{tpu_custom_call.1} parent=1 // pred_check
      _
    $region23: #{tpu_custom_call.1} parent=1 // pred_check_branch
      %71 = sbr.rel (0) target = $region25
    $region24: #{tpu_custom_call.1} parent=1 // pred_region
      %73 = vsyncadd [#allocation13], 0
      %s74 = sshll.u32 %s5, 4
      %s75 = int_to_ptr.hbm [resolvable:$true] %s74
      %s76 = sshll.u32 [#allocation14], 4
      %s77 = int_to_ptr.vmem [resolvable:$true] %s76
      %82 = dma.hbm_to_vmem [thread:$0]  %s75, 512, %s77, [#allocation13], 128, 128, 8
    $region25: #{tpu_custom_call.1} parent=1 // pred_fallthru
      _
    // Predicated region
    $region26: #{tpu_custom_call.1} parent=1 // pred_check
      _
    $region27: #{tpu_custom_call.1} parent=1 // pred_check_branch
      %84 = sbr.rel (0) target = $region29
    $region28: #{tpu_custom_call.1} parent=1 // pred_region
      _
    $region29: #{tpu_custom_call.1} parent=1 // pred_fallthru
      _
    // Predicated region
    $region30: #{tpu_custom_call.1} parent=1 // pred_check
      _
    $region31: #{tpu_custom_call.1} parent=1 // pred_check_branch
      %86 = sbr.rel (0) target = $region33
    $region32: #{tpu_custom_call.1} parent=1 // pred_region
      %88 = dma.done [#allocation7], 1024
    $region33: #{tpu_custom_call.1} parent=1 // pred_fallthru
      _
    // Predicated region
    $region34: #{tpu_custom_call.1} parent=1 // pred_check
      _
    $region35: #{tpu_custom_call.1} parent=1 // pred_check_branch
      %90 = sbr.rel (0) target = $region37
    $region36: #{tpu_custom_call.1} parent=1 // pred_region
      %92 = dma.done [#allocation10], 256
    $region37: #{tpu_custom_call.1} parent=1 // pred_fallthru
      _
    // Predicated region
    $region38: #{tpu_custom_call.1} parent=1 // pred_check
      _
    $region39: #{tpu_custom_call.1} parent=1 // pred_check_branch
      %94 = sbr.rel (0) target = $region41
    $region40: #{tpu_custom_call.1} parent=1 // pred_region
      %96 = dma.done [#allocation10], 512
    $region41: #{tpu_custom_call.1} parent=1 // pred_fallthru
      _
    // Predicated region
    $region42: #{tpu_custom_call.1} parent=1 // pred_check
      _
    $region43: #{tpu_custom_call.1} parent=1 // pred_check_branch
      %98 = sbr.rel (0) target = $region45
    $region44: #{tpu_custom_call.1} parent=1 // pred_region
      %100 = dma.done [#allocation13], 512
    $region45: #{tpu_custom_call.1} parent=1 // pred_fallthru
      _
    // Predicated region
    $region46: #{tpu_custom_call.1} parent=1 // pred_check
      _
    $region47: #{tpu_custom_call.1} parent=1 // pred_check_branch
      %102 = sbr.rel (0) target = $region49
    $region48: #{tpu_custom_call.1} parent=1 // pred_region
      %104 = dma.done [#allocation13], 512
    $region49: #{tpu_custom_call.1} parent=1 // pred_fallthru
      _
    %p105 = scmp.eq.s32.totalorder 0, 0
    // Predicated region
    $region50: #{tpu_custom_call.1} parent=1 // pred_check
      %p106 = pneg %p105
    $region51: #{tpu_custom_call.1} parent=1 // pred_check_branch
      %108 = sbr.rel (%p106) target = $region53
    $region52: #{tpu_custom_call.1} parent=1 // pred_region
      %vm109 = vcmask 261120
      %110 = vst.msk [vmem:[#allocation2] sm:$0xff] %vm109, 0.0
      %111 = vst.msk [vmem:[#allocation3] sm:$0xff] %vm109, 0.0
      %112 = vst.msk [vmem:[#allocation4] sm:$0xff] %vm109, 0.0
      %113 = vst.msk [vmem:[#allocation5] sm:$0xff] %vm109, 0.0
    $region53: #{tpu_custom_call.1} parent=1 // pred_fallthru
      _
    %v114 = vld [vmem:[#allocation11] sm:$0xff]
    %v115 = vld [vmem:[#allocation11 + $0x8] sm:$0xff]
    %v116 = vld [vmem:[#allocation11 + $0x10] sm:$0xff]
    %v117 = vld [vmem:[#allocation11 + $0x18] sm:$0xff]
    %v118 = vld [vmem:[#allocation12] sm:$0xff]
    %v119 = vld [vmem:[#allocation12 + $0x8] sm:$0xff]
    %v120 = vld [vmem:[#allocation12 + $0x10] sm:$0xff]
    %v121 = vld [vmem:[#allocation12 + $0x18] sm:$0xff]
    %v122 = vld [vmem:[#allocation14] sm:$0xff]
    %v123 = vld [vmem:[#allocation14 + $0x8] sm:$0xff]
    %v124 = vld [vmem:[#allocation14 + $0x10] sm:$0xff]
    %v125 = vld [vmem:[#allocation14 + $0x18] sm:$0xff]
    %v126 = vld [vmem:[%s6] sm:$0x1]
    %v128 = vperm.slane %v126, 0
    %v130 = vld [vmem:[#allocation6] sm:$0xff]
    %v131 = vld [vmem:[#allocation6 + $0x8] sm:$0xff]
    %v132 = vld [vmem:[#allocation6 + $0x10] sm:$0xff]
    %v133 = vld [vmem:[#allocation6 + $0x18] sm:$0xff]
    %v134 = vld [vmem:[#allocation6 + $0x20] sm:$0xff]
    %v135 = vld [vmem:[#allocation6 + $0x28] sm:$0xff]
    %v136 = vld [vmem:[#allocation6 + $0x30] sm:$0xff]
    %v137 = vld [vmem:[#allocation6 + $0x38] sm:$0xff]
    %v138 = vld [vmem:[#allocation9] sm:$0xff]
    %v139 = vld [vmem:[#allocation9 + $0x8] sm:$0xff]
    %v140 = vld [vmem:[%s3] sm:$0x1]
    %v142 = vperm.slane %v140, 0
    %vm144 = vcmask 130048
    %v146 = vsel %vm144, %v130, 0
    %v149 = vsel %vm144, %v131, 0
    %v152 = vsel %vm144, %v132, 0
    %v155 = vsel %vm144, %v133, 0
    %v158 = vsel %vm144, %v134, 0
    %v161 = vsel %vm144, %v135, 0
    %v164 = vsel %vm144, %v136, 0
    %v167 = vsel %vm144, %v137, 0
    %169 = vmatpush.msra.mxu0 0.0
    %170 = vmatpush.msra.mxu0 0.0
    %171 = vmatpush.msra.mxu0 0.0
    %172 = vmatpush.msra.mxu0 0.0
    %173 = vmatpush.msra.mxu0 0.0
    %174 = vmatpush.msra.mxu0 0.0
    %175 = vmatpush.msra.mxu0 0.0
    %176 = vmatpush.msra.mxu0 0.0
    %177 = vmatpush.msra.mxu0 0.0
    %178 = vmatpush.msra.mxu0 0.0
    %179 = vmatpush.msra.mxu0 0.0
    %180 = vmatpush.msra.mxu0 0.0
    %181 = vmatpush.msra.mxu0 0.0
    %182 = vmatpush.msra.mxu0 0.0
    %183 = vmatpush.msra.mxu0 %v139
    %184 = vmatpush.msra.mxu0 %v138
    %185 = vmatmul.f32.gmra.mxu0 %v146
    %v186 = vpop.f32.mrf.mxu0
    %v187 = vadd.f32 %v142, %v186
    %188 = vmatmul.f32.gmra.mxu0 %v149
    %v189 = vpop.f32.mrf.mxu0
    %v190 = vadd.f32 %v142, %v189
    %191 = vmatmul.f32.gmra.mxu0 %v152
    %v192 = vpop.f32.mrf.mxu0
    %v193 = vadd.f32 %v142, %v192
    %194 = vmatmul.f32.gmra.mxu0 %v155
    %v195 = vpop.f32.mrf.mxu0
    %v196 = vadd.f32 %v142, %v195
    %197 = vmatmul.f32.gmra.mxu0 %v158
    %v198 = vpop.f32.mrf.mxu0
    %v199 = vadd.f32 %v142, %v198
    %200 = vmatmul.f32.gmra.mxu0 %v161
    %v201 = vpop.f32.mrf.mxu0
    %v202 = vadd.f32 %v142, %v201
    %203 = vmatmul.f32.gmra.mxu0 %v164
    %v204 = vpop.f32.mrf.mxu0
    %v205 = vadd.f32 %v142, %v204
    %206 = vmatmul.f32.gmra.mxu0 %v167
    %v207 = vpop.f32.mrf.mxu0
    %v208 = vadd.f32 %v142, %v207
    %209 = vdwg.mxu0
    %v210 = vld [vmem:[#allocation2] sm:$0xff]
    %v211 = vld [vmem:[#allocation3] sm:$0xff]
    %v212 = vld [vmem:[#allocation4] sm:$0xff]
    %v213 = vld [vmem:[#allocation5] sm:$0xff]
    %vm214 = vcmask 261120
    %v216 = vsel %vm214, %v210, 0
    %218 = vmatpush.msra.mxu0 0.0
    %219 = vmatpush.msra.mxu0 0.0
    %220 = vmatpush.msra.mxu0 0.0
    %221 = vmatpush.msra.mxu0 0.0
    %222 = vmatpush.msra.mxu0 0.0
    %223 = vmatpush.msra.mxu0 0.0
    %224 = vmatpush.msra.mxu0 0.0
    %225 = vmatpush.msra.mxu0 0.0
    %226 = vmatpush.msra.mxu0 0.0
    %227 = vmatpush.msra.mxu0 0.0
    %228 = vmatpush.msra.mxu0 0.0
    %229 = vmatpush.msra.mxu0 0.0
    %230 = vmatpush.msra.mxu0 %v117
    %231 = vmatpush.msra.mxu0 %v116
    %232 = vmatpush.msra.mxu0 %v115
    %233 = vmatpush.msra.mxu0 %v114
    %234 = vmatmul.f32.gmra.mxu0 %v216
    %v235 = vpop.f32.mrf.mxu0
    %v236 = vadd.f32 0.0, %v235
    %237 = vdwg.mxu0
    %v238 = vadd.f32 %v187, %v236
    %v239 = vxor.u32 %v238, 2147483648
    %v240 = vmul.f32 %v239, 1.442695
    %v241 = vpow.pop %v240
    %v242 = vadd.f32 %v241, 1.0
    %v243 = vrcp.pop %v242
    %v244 = vmul.f32 %v242, %v243
    %v245 = vsub.f32 1.0, %v244
    %v246 = vmul.f32 %v243, %v245
    %v247 = vadd.f32 %v243, %v246
    %vm248 = vweird.f32 %v242
    %vm249 = vweird.f32 %v243
    %vm250 = vmor %vm248, %vm249
    %v251 = vsel %vm250, %v243, %v247
    %v252 = vand.u32 2147483647, %v242
    %vm253 = vcmp.eq.f32.partialorder %v252, 8.507059e+37
    %v254 = vand.u32 %v242, 2147483648
    %v255 = vor.u32 1.1754944e-38, %v254
    %v256 = vsel %vm253, %v255, %v251
    %v257 = vmul.f32 1.0, %v256
    %v258 = vtanh.pop %v238
    %260 = vrot.lane.b32.xlu0 %v211, 32
    %v261 = vpop.permute.xlu0 %260
    %v263 = vmul.f32 %v257, %v261
    %265 = vrot.lane.b32.xlu0 %v258, 64
    %v266 = vpop.permute.xlu0 %265
    %v268 = vmul.f32 %v257, %v266
    %270 = vrot.lane.b32.xlu0 %v268, 32
    %v271 = vpop.permute.xlu0 %270
    %v273 = vadd.f32 %v263, %v271
    %v274 = vtanh.pop %v273
    %276 = vrot.lane.b32.xlu0 %v274, 64
    %v277 = vpop.permute.xlu0 %276
    %v279 = vmul.f32 %v257, %v277
    %v281 = vsel %vm214, %v212, 0
    %283 = vmatpush.msra.mxu0 0.0
    %284 = vmatpush.msra.mxu0 0.0
    %285 = vmatpush.msra.mxu0 0.0
    %286 = vmatpush.msra.mxu0 0.0
    %287 = vmatpush.msra.mxu0 0.0
    %288 = vmatpush.msra.mxu0 0.0
    %289 = vmatpush.msra.mxu0 0.0
    %290 = vmatpush.msra.mxu0 0.0
    %291 = vmatpush.msra.mxu0 0.0
    %292 = vmatpush.msra.mxu0 0.0
    %293 = vmatpush.msra.mxu0 0.0
    %294 = vmatpush.msra.mxu0 0.0
    %295 = vmatpush.msra.mxu0 %v125
    %296 = vmatpush.msra.mxu0 %v124
    %297 = vmatpush.msra.mxu0 %v123
    %298 = vmatpush.msra.mxu0 %v122
    %299 = vmatmul.f32.gmra.mxu0 %v281
    %v300 = vpop.f32.mrf.mxu0
    %v301 = vadd.f32 0.0, %v300
    %302 = vdwg.mxu0
    %304 = vrot.lane.b32.xlu0 %v279, 32
    %v305 = vpop.permute.xlu0 %304
    %v306 = vsel %vm214, %v305, 0
    %308 = vmatpush.msra.mxu0 0.0
    %309 = vmatpush.msra.mxu0 0.0
    %310 = vmatpush.msra.mxu0 0.0
    %311 = vmatpush.msra.mxu0 0.0
    %312 = vmatpush.msra.mxu0 0.0
    %313 = vmatpush.msra.mxu0 0.0
    %314 = vmatpush.msra.mxu0 0.0
    %315 = vmatpush.msra.mxu0 0.0
    %316 = vmatpush.msra.mxu0 0.0
    %317 = vmatpush.msra.mxu0 0.0
    %318 = vmatpush.msra.mxu0 0.0
    %319 = vmatpush.msra.mxu0 0.0
    %320 = vmatpush.msra.mxu0 %v121
    %321 = vmatpush.msra.mxu0 %v120
    %322 = vmatpush.msra.mxu0 %v119
    %323 = vmatpush.msra.mxu0 %v118
    %324 = vmatmul.f32.gmra.mxu0 %v306
    %v325 = vpop.f32.mrf.mxu0
    %v326 = vadd.f32 %v301, %v325
    %327 = vdwg.mxu0
    %v328 = vadd.f32 %v326, %v128
    %v329 = vxor.u32 %v328, 2147483648
    %v330 = vmul.f32 %v329, 1.442695
    %v331 = vpow.pop %v330
    %v332 = vadd.f32 %v331, 1.0
    %v333 = vrcp.pop %v332
    %v334 = vmul.f32 %v332, %v333
    %v335 = vsub.f32 1.0, %v334
    %v336 = vmul.f32 %v333, %v335
    %v337 = vadd.f32 %v333, %v336
    %vm338 = vweird.f32 %v332
    %vm339 = vweird.f32 %v333
    %vm340 = vmor %vm338, %vm339
    %v341 = vsel %vm340, %v333, %v337
    %v342 = vand.u32 2147483647, %v332
    %vm343 = vcmp.eq.f32.partialorder %v342, 8.507059e+37
    %v344 = vand.u32 %v332, 2147483648
    %v345 = vor.u32 1.1754944e-38, %v344
    %v346 = vsel %vm343, %v345, %v341
    %v347 = vmul.f32 1.0, %v346
    %v348 = vtanh.pop %v328
    %350 = vrot.lane.b32.xlu0 %v213, 32
    %v351 = vpop.permute.xlu0 %350
    %v353 = vmul.f32 %v347, %v351
    %355 = vrot.lane.b32.xlu0 %v348, 64
    %v356 = vpop.permute.xlu0 %355
    %v358 = vmul.f32 %v347, %v356
    %360 = vrot.lane.b32.xlu0 %v358, 32
    %v361 = vpop.permute.xlu0 %360
    %v363 = vadd.f32 %v353, %v361
    %v364 = vtanh.pop %v363
    %366 = vrot.lane.b32.xlu0 %v364, 64
    %v367 = vpop.permute.xlu0 %366
    %v369 = vmul.f32 %v347, %v367
    %371 = vrot.lane.b32.xlu0 %v369, 32
    %v372 = vpop.permute.xlu0 %371
    %374 = vst.msk [vmem:[#allocation15] sm:$0xff] %vm214, %v372
    %375 = vmatpush.msra.mxu0 0.0
    %376 = vmatpush.msra.mxu0 0.0
    %377 = vmatpush.msra.mxu0 0.0
    %378 = vmatpush.msra.mxu0 0.0
    %379 = vmatpush.msra.mxu0 0.0
    %380 = vmatpush.msra.mxu0 0.0
    %381 = vmatpush.msra.mxu0 0.0
    %382 = vmatpush.msra.mxu0 0.0
    %383 = vmatpush.msra.mxu0 0.0
    %384 = vmatpush.msra.mxu0 0.0
    %385 = vmatpush.msra.mxu0 0.0
    %386 = vmatpush.msra.mxu0 0.0
    %387 = vmatpush.msra.mxu0 %v117
    %388 = vmatpush.msra.mxu0 %v116
    %389 = vmatpush.msra.mxu0 %v115
    %390 = vmatpush.msra.mxu0 %v114
    %391 = vmatmul.f32.gmra.mxu0 %v306
    %v392 = vpop.f32.mrf.mxu0
    %v393 = vadd.f32 0.0, %v392
    %394 = vdwg.mxu0
    %v395 = vadd.f32 %v190, %v393
    %v396 = vxor.u32 %v395, 2147483648
    %v397 = vmul.f32 %v396, 1.442695
    %v398 = vpow.pop %v397
    %v399 = vadd.f32 %v398, 1.0
    %v400 = vrcp.pop %v399
    %v401 = vmul.f32 %v399, %v400
    %v402 = vsub.f32 1.0, %v401
    %v403 = vmul.f32 %v400, %v402
    %v404 = vadd.f32 %v400, %v403
    %vm405 = vweird.f32 %v399
    %vm406 = vweird.f32 %v400
    %vm407 = vmor %vm405, %vm406
    %v408 = vsel %vm407, %v400, %v404
    %v409 = vand.u32 2147483647, %v399
    %vm410 = vcmp.eq.f32.partialorder %v409, 8.507059e+37
    %v411 = vand.u32 %v399, 2147483648
    %v412 = vor.u32 1.1754944e-38, %v411
    %v413 = vsel %vm410, %v412, %v408
    %v414 = vmul.f32 1.0, %v413
    %v415 = vtanh.pop %v395
    %v416 = vmul.f32 %v414, %v273
    %418 = vrot.lane.b32.xlu0 %v415, 64
    %v419 = vpop.permute.xlu0 %418
    %v421 = vmul.f32 %v414, %v419
    %423 = vrot.lane.b32.xlu0 %v421, 32
    %v424 = vpop.permute.xlu0 %423
    %v426 = vadd.f32 %v416, %v424
    %v427 = vtanh.pop %v426
    %429 = vrot.lane.b32.xlu0 %v427, 64
    %v430 = vpop.permute.xlu0 %429
    %v432 = vmul.f32 %v414, %v430
    %v433 = vsel %vm214, %v372, 0
    %435 = vmatpush.msra.mxu0 0.0
    %436 = vmatpush.msra.mxu0 0.0
    %437 = vmatpush.msra.mxu0 0.0
    %438 = vmatpush.msra.mxu0 0.0
    %439 = vmatpush.msra.mxu0 0.0
    %440 = vmatpush.msra.mxu0 0.0
    %441 = vmatpush.msra.mxu0 0.0
    %442 = vmatpush.msra.mxu0 0.0
    %443 = vmatpush.msra.mxu0 0.0
    %444 = vmatpush.msra.mxu0 0.0
    %445 = vmatpush.msra.mxu0 0.0
    %446 = vmatpush.msra.mxu0 0.0
    %447 = vmatpush.msra.mxu0 %v125
    %448 = vmatpush.msra.mxu0 %v124
    %449 = vmatpush.msra.mxu0 %v123
    %450 = vmatpush.msra.mxu0 %v122
    %451 = vmatmul.f32.gmra.mxu0 %v433
    %v452 = vpop.f32.mrf.mxu0
    %v453 = vadd.f32 0.0, %v452
    %454 = vdwg.mxu0
    %456 = vrot.lane.b32.xlu0 %v432, 32
    %v457 = vpop.permute.xlu0 %456
    %v458 = vsel %vm214, %v457, 0
    %460 = vmatpush.msra.mxu0 0.0
    %461 = vmatpush.msra.mxu0 0.0
    %462 = vmatpush.msra.mxu0 0.0
    %463 = vmatpush.msra.mxu0 0.0
    %464 = vmatpush.msra.mxu0 0.0
    %465 = vmatpush.msra.mxu0 0.0
    %466 = vmatpush.msra.mxu0 0.0
    %467 = vmatpush.msra.mxu0 0.0
    %468 = vmatpush.msra.mxu0 0.0
    %469 = vmatpush.msra.mxu0 0.0
    %470 = vmatpush.msra.mxu0 0.0
    %471 = vmatpush.msra.mxu0 0.0
    %472 = vmatpush.msra.mxu0 %v121
    %473 = vmatpush.msra.mxu0 %v120
    %474 = vmatpush.msra.mxu0 %v119
    %475 = vmatpush.msra.mxu0 %v118
    %476 = vmatmul.f32.gmra.mxu0 %v458
    %v477 = vpop.f32.mrf.mxu0
    %v478 = vadd.f32 %v453, %v477
    %479 = vdwg.mxu0
    %v480 = vadd.f32 %v478, %v128
    %v481 = vxor.u32 %v480, 2147483648
    %v482 = vmul.f32 %v481, 1.442695
    %v483 = vpow.pop %v482
    %v484 = vadd.f32 %v483, 1.0
    %v485 = vrcp.pop %v484
    %v486 = vmul.f32 %v484, %v485
    %v487 = vsub.f32 1.0, %v486
    %v488 = vmul.f32 %v485, %v487
    %v489 = vadd.f32 %v485, %v488
    %vm490 = vweird.f32 %v484
    %vm491 = vweird.f32 %v485
    %vm492 = vmor %vm490, %vm491
    %v493 = vsel %vm492, %v485, %v489
    %v494 = vand.u32 2147483647, %v484
    %vm495 = vcmp.eq.f32.partialorder %v494, 8.507059e+37
    %v496 = vand.u32 %v484, 2147483648
    %v497 = vor.u32 1.1754944e-38, %v496
    %v498 = vsel %vm495, %v497, %v493
    %v499 = vmul.f32 1.0, %v498
    %v500 = vtanh.pop %v480
    %v501 = vmul.f32 %v499, %v363
    %503 = vrot.lane.b32.xlu0 %v500, 64
    %v504 = vpop.permute.xlu0 %503
    %v506 = vmul.f32 %v499, %v504
    %508 = vrot.lane.b32.xlu0 %v506, 32
    %v509 = vpop.permute.xlu0 %508
    %v511 = vadd.f32 %v501, %v509
    %v512 = vtanh.pop %v511
    %514 = vrot.lane.b32.xlu0 %v512, 64
    %v515 = vpop.permute.xlu0 %514
    %v517 = vmul.f32 %v499, %v515
    %519 = vrot.lane.b32.xlu0 %v517, 32
    %v520 = vpop.permute.xlu0 %519
    %s522 = scalar_lea.vmem [#allocation15], 8
    %523 = vst.msk [vmem:[%s522] sm:$0xff] %vm214, %v520
    %524 = vmatpush.msra.mxu0 0.0
    %525 = vmatpush.msra.mxu0 0.0
    %526 = vmatpush.msra.mxu0 0.0
    %527 = vmatpush.msra.mxu0 0.0
    %528 = vmatpush.msra.mxu0 0.0
    %529 = vmatpush.msra.mxu0 0.0
    %530 = vmatpush.msra.mxu0 0.0
    %531 = vmatpush.msra.mxu0 0.0
    %532 = vmatpush.msra.mxu0 0.0
    %533 = vmatpush.msra.mxu0 0.0
    %534 = vmatpush.msra.mxu0 0.0
    %535 = vmatpush.msra.mxu0 0.0
    %536 = vmatpush.msra.mxu0 %v117
    %537 = vmatpush.msra.mxu0 %v116
    %538 = vmatpush.msra.mxu0 %v115
    %539 = vmatpush.msra.mxu0 %v114
    %540 = vmatmul.f32.gmra.mxu0 %v458
    %v541 = vpop.f32.mrf.mxu0
    %v542 = vadd.f32 0.0, %v541
    %543 = vdwg.mxu0
    %v544 = vadd.f32 %v193, %v542
    %v545 = vxor.u32 %v544, 2147483648
    %v546 = vmul.f32 %v545, 1.442695
    %v547 = vpow.pop %v546
    %v548 = vadd.f32 %v547, 1.0
    %v549 = vrcp.pop %v548
    %v550 = vmul.f32 %v548, %v549
    %v551 = vsub.f32 1.0, %v550
    %v552 = vmul.f32 %v549, %v551
    %v553 = vadd.f32 %v549, %v552
    %vm554 = vweird.f32 %v548
    %vm555 = vweird.f32 %v549
    %vm556 = vmor %vm554, %vm555
    %v557 = vsel %vm556, %v549, %v553
    %v558 = vand.u32 2147483647, %v548
    %vm559 = vcmp.eq.f32.partialorder %v558, 8.507059e+37
    %v560 = vand.u32 %v548, 2147483648
    %v561 = vor.u32 1.1754944e-38, %v560
    %v562 = vsel %vm559, %v561, %v557
    %v563 = vmul.f32 1.0, %v562
    %v564 = vtanh.pop %v544
    %v565 = vmul.f32 %v563, %v426
    %567 = vrot.lane.b32.xlu0 %v564, 64
    %v568 = vpop.permute.xlu0 %567
    %v570 = vmul.f32 %v563, %v568
    %572 = vrot.lane.b32.xlu0 %v570, 32
    %v573 = vpop.permute.xlu0 %572
    %v575 = vadd.f32 %v565, %v573
    %v576 = vtanh.pop %v575
    %578 = vrot.lane.b32.xlu0 %v576, 64
    %v579 = vpop.permute.xlu0 %578
    %v581 = vmul.f32 %v563, %v579
    %v582 = vsel %vm214, %v520, 0
    %584 = vmatpush.msra.mxu0 0.0
    %585 = vmatpush.msra.mxu0 0.0
    %586 = vmatpush.msra.mxu0 0.0
    %587 = vmatpush.msra.mxu0 0.0
    %588 = vmatpush.msra.mxu0 0.0
    %589 = vmatpush.msra.mxu0 0.0
    %590 = vmatpush.msra.mxu0 0.0
    %591 = vmatpush.msra.mxu0 0.0
    %592 = vmatpush.msra.mxu0 0.0
    %593 = vmatpush.msra.mxu0 0.0
    %594 = vmatpush.msra.mxu0 0.0
    %595 = vmatpush.msra.mxu0 0.0
    %596 = vmatpush.msra.mxu0 %v125
    %597 = vmatpush.msra.mxu0 %v124
    %598 = vmatpush.msra.mxu0 %v123
    %599 = vmatpush.msra.mxu0 %v122
    %600 = vmatmul.f32.gmra.mxu0 %v582
    %v601 = vpop.f32.mrf.mxu0
    %v602 = vadd.f32 0.0, %v601
    %603 = vdwg.mxu0
    %605 = vrot.lane.b32.xlu0 %v581, 32
    %v606 = vpop.permute.xlu0 %605
    %v607 = vsel %vm214, %v606, 0
    %609 = vmatpush.msra.mxu0 0.0
    %610 = vmatpush.msra.mxu0 0.0
    %611 = vmatpush.msra.mxu0 0.0
    %612 = vmatpush.msra.mxu0 0.0
    %613 = vmatpush.msra.mxu0 0.0
    %614 = vmatpush.msra.mxu0 0.0
    %615 = vmatpush.msra.mxu0 0.0
    %616 = vmatpush.msra.mxu0 0.0
    %617 = vmatpush.msra.mxu0 0.0
    %618 = vmatpush.msra.mxu0 0.0
    %619 = vmatpush.msra.mxu0 0.0
    %620 = vmatpush.msra.mxu0 0.0
    %621 = vmatpush.msra.mxu0 %v121
    %622 = vmatpush.msra.mxu0 %v120
    %623 = vmatpush.msra.mxu0 %v119
    %624 = vmatpush.msra.mxu0 %v118
    %625 = vmatmul.f32.gmra.mxu0 %v607
    %v626 = vpop.f32.mrf.mxu0
    %v627 = vadd.f32 %v602, %v626
    %628 = vdwg.mxu0
    %v629 = vadd.f32 %v627, %v128
    %v630 = vxor.u32 %v629, 2147483648
    %v631 = vmul.f32 %v630, 1.442695
    %v632 = vpow.pop %v631
    %v633 = vadd.f32 %v632, 1.0
    %v634 = vrcp.pop %v633
    %v635 = vmul.f32 %v633, %v634
    %v636 = vsub.f32 1.0, %v635
    %v637 = vmul.f32 %v634, %v636
    %v638 = vadd.f32 %v634, %v637
    %vm639 = vweird.f32 %v633
    %vm640 = vweird.f32 %v634
    %vm641 = vmor %vm639, %vm640
    %v642 = vsel %vm641, %v634, %v638
    %v643 = vand.u32 2147483647, %v633
    %vm644 = vcmp.eq.f32.partialorder %v643, 8.507059e+37
    %v645 = vand.u32 %v633, 2147483648
    %v646 = vor.u32 1.1754944e-38, %v645
    %v647 = vsel %vm644, %v646, %v642
    %v648 = vmul.f32 1.0, %v647
    %v649 = vtanh.pop %v629
    %v650 = vmul.f32 %v648, %v511
    %652 = vrot.lane.b32.xlu0 %v649, 64
    %v653 = vpop.permute.xlu0 %652
    %v655 = vmul.f32 %v648, %v653
    %657 = vrot.lane.b32.xlu0 %v655, 32
    %v658 = vpop.permute.xlu0 %657
    %v660 = vadd.f32 %v650, %v658
    %v661 = vtanh.pop %v660
    %663 = vrot.lane.b32.xlu0 %v661, 64
    %v664 = vpop.permute.xlu0 %663
    %v666 = vmul.f32 %v648, %v664
    %668 = vrot.lane.b32.xlu0 %v666, 32
    %v669 = vpop.permute.xlu0 %668
    %s671 = scalar_lea.vmem [#allocation15], 16
    %672 = vst.msk [vmem:[%s671] sm:$0xff] %vm214, %v669
    %673 = vmatpush.msra.mxu0 0.0
    %674 = vmatpush.msra.mxu0 0.0
    %675 = vmatpush.msra.mxu0 0.0
    %676 = vmatpush.msra.mxu0 0.0
    %677 = vmatpush.msra.mxu0 0.0
    %678 = vmatpush.msra.mxu0 0.0
    %679 = vmatpush.msra.mxu0 0.0
    %680 = vmatpush.msra.mxu0 0.0
    %681 = vmatpush.msra.mxu0 0.0
    %682 = vmatpush.msra.mxu0 0.0
    %683 = vmatpush.msra.mxu0 0.0
    %684 = vmatpush.msra.mxu0 0.0
    %685 = vmatpush.msra.mxu0 %v117
    %686 = vmatpush.msra.mxu0 %v116
    %687 = vmatpush.msra.mxu0 %v115
    %688 = vmatpush.msra.mxu0 %v114
    %689 = vmatmul.f32.gmra.mxu0 %v607
    %v690 = vpop.f32.mrf.mxu0
    %v691 = vadd.f32 0.0, %v690
    %692 = vdwg.mxu0
    %v693 = vadd.f32 %v196, %v691
    %v694 = vxor.u32 %v693, 2147483648
    %v695 = vmul.f32 %v694, 1.442695
    %v696 = vpow.pop %v695
    %v697 = vadd.f32 %v696, 1.0
    %v698 = vrcp.pop %v697
    %v699 = vmul.f32 %v697, %v698
    %v700 = vsub.f32 1.0, %v699
    %v701 = vmul.f32 %v698, %v700
    %v702 = vadd.f32 %v698, %v701
    %vm703 = vweird.f32 %v697
    %vm704 = vweird.f32 %v698
    %vm705 = vmor %vm703, %vm704
    %v706 = vsel %vm705, %v698, %v702
    %v707 = vand.u32 2147483647, %v697
    %vm708 = vcmp.eq.f32.partialorder %v707, 8.507059e+37
    %v709 = vand.u32 %v697, 2147483648
    %v710 = vor.u32 1.1754944e-38, %v709
    %v711 = vsel %vm708, %v710, %v706
    %v712 = vmul.f32 1.0, %v711
    %v713 = vtanh.pop %v693
    %v714 = vmul.f32 %v712, %v575
    %716 = vrot.lane.b32.xlu0 %v713, 64
    %v717 = vpop.permute.xlu0 %716
    %v719 = vmul.f32 %v712, %v717
    %721 = vrot.lane.b32.xlu0 %v719, 32
    %v722 = vpop.permute.xlu0 %721
    %v724 = vadd.f32 %v714, %v722
    %v725 = vtanh.pop %v724
    %727 = vrot.lane.b32.xlu0 %v725, 64
    %v728 = vpop.permute.xlu0 %727
    %v730 = vmul.f32 %v712, %v728
    %v731 = vsel %vm214, %v669, 0
    %733 = vmatpush.msra.mxu0 0.0
    %734 = vmatpush.msra.mxu0 0.0
    %735 = vmatpush.msra.mxu0 0.0
    %736 = vmatpush.msra.mxu0 0.0
    %737 = vmatpush.msra.mxu0 0.0
    %738 = vmatpush.msra.mxu0 0.0
    %739 = vmatpush.msra.mxu0 0.0
    %740 = vmatpush.msra.mxu0 0.0
    %741 = vmatpush.msra.mxu0 0.0
    %742 = vmatpush.msra.mxu0 0.0
    %743 = vmatpush.msra.mxu0 0.0
    %744 = vmatpush.msra.mxu0 0.0
    %745 = vmatpush.msra.mxu0 %v125
    %746 = vmatpush.msra.mxu0 %v124
    %747 = vmatpush.msra.mxu0 %v123
    %748 = vmatpush.msra.mxu0 %v122
    %749 = vmatmul.f32.gmra.mxu0 %v731
    %v750 = vpop.f32.mrf.mxu0
    %v751 = vadd.f32 0.0, %v750
    %752 = vdwg.mxu0
    %754 = vrot.lane.b32.xlu0 %v730, 32
    %v755 = vpop.permute.xlu0 %754
    %v756 = vsel %vm214, %v755, 0
    %758 = vmatpush.msra.mxu0 0.0
    %759 = vmatpush.msra.mxu0 0.0
    %760 = vmatpush.msra.mxu0 0.0
    %761 = vmatpush.msra.mxu0 0.0
    %762 = vmatpush.msra.mxu0 0.0
    %763 = vmatpush.msra.mxu0 0.0
    %764 = vmatpush.msra.mxu0 0.0
    %765 = vmatpush.msra.mxu0 0.0
    %766 = vmatpush.msra.mxu0 0.0
    %767 = vmatpush.msra.mxu0 0.0
    %768 = vmatpush.msra.mxu0 0.0
    %769 = vmatpush.msra.mxu0 0.0
    %770 = vmatpush.msra.mxu0 %v121
    %771 = vmatpush.msra.mxu0 %v120
    %772 = vmatpush.msra.mxu0 %v119
    %773 = vmatpush.msra.mxu0 %v118
    %774 = vmatmul.f32.gmra.mxu0 %v756
    %v775 = vpop.f32.mrf.mxu0
    %v776 = vadd.f32 %v751, %v775
    %777 = vdwg.mxu0
    %v778 = vadd.f32 %v776, %v128
    %v779 = vxor.u32 %v778, 2147483648
    %v780 = vmul.f32 %v779, 1.442695
    %v781 = vpow.pop %v780
    %v782 = vadd.f32 %v781, 1.0
    %v783 = vrcp.pop %v782
    %v784 = vmul.f32 %v782, %v783
    %v785 = vsub.f32 1.0, %v784
    %v786 = vmul.f32 %v783, %v785
    %v787 = vadd.f32 %v783, %v786
    %vm788 = vweird.f32 %v782
    %vm789 = vweird.f32 %v783
    %vm790 = vmor %vm788, %vm789
    %v791 = vsel %vm790, %v783, %v787
    %v792 = vand.u32 2147483647, %v782
    %vm793 = vcmp.eq.f32.partialorder %v792, 8.507059e+37
    %v794 = vand.u32 %v782, 2147483648
    %v795 = vor.u32 1.1754944e-38, %v794
    %v796 = vsel %vm793, %v795, %v791
    %v797 = vmul.f32 1.0, %v796
    %v798 = vtanh.pop %v778
    %v799 = vmul.f32 %v797, %v660
    %801 = vrot.lane.b32.xlu0 %v798, 64
    %v802 = vpop.permute.xlu0 %801
    %v804 = vmul.f32 %v797, %v802
    %806 = vrot.lane.b32.xlu0 %v804, 32
    %v807 = vpop.permute.xlu0 %806
    %v809 = vadd.f32 %v799, %v807
    %v810 = vtanh.pop %v809
    %812 = vrot.lane.b32.xlu0 %v810, 64
    %v813 = vpop.permute.xlu0 %812
    %v815 = vmul.f32 %v797, %v813
    %817 = vrot.lane.b32.xlu0 %v815, 32
    %v818 = vpop.permute.xlu0 %817
    %s820 = scalar_lea.vmem [#allocation15], 24
    %821 = vst.msk [vmem:[%s820] sm:$0xff] %vm214, %v818
    %822 = vmatpush.msra.mxu0 0.0
    %823 = vmatpush.msra.mxu0 0.0
    %824 = vmatpush.msra.mxu0 0.0
    %825 = vmatpush.msra.mxu0 0.0
    %826 = vmatpush.msra.mxu0 0.0
    %827 = vmatpush.msra.mxu0 0.0
    %828 = vmatpush.msra.mxu0 0.0
    %829 = vmatpush.msra.mxu0 0.0
    %830 = vmatpush.msra.mxu0 0.0
    %831 = vmatpush.msra.mxu0 0.0
    %832 = vmatpush.msra.mxu0 0.0
    %833 = vmatpush.msra.mxu0 0.0
    %834 = vmatpush.msra.mxu0 %v117
    %835 = vmatpush.msra.mxu0 %v116
    %836 = vmatpush.msra.mxu0 %v115
    %837 = vmatpush.msra.mxu0 %v114
    %838 = vmatmul.f32.gmra.mxu0 %v756
    %v839 = vpop.f32.mrf.mxu0
    %v840 = vadd.f32 0.0, %v839
    %841 = vdwg.mxu0
    %v842 = vadd.f32 %v199, %v840
    %v843 = vxor.u32 %v842, 2147483648
    %v844 = vmul.f32 %v843, 1.442695
    %v845 = vpow.pop %v844
    %v846 = vadd.f32 %v845, 1.0
    %v847 = vrcp.pop %v846
    %v848 = vmul.f32 %v846, %v847
    %v849 = vsub.f32 1.0, %v848
    %v850 = vmul.f32 %v847, %v849
    %v851 = vadd.f32 %v847, %v850
    %vm852 = vweird.f32 %v846
    %vm853 = vweird.f32 %v847
    %vm854 = vmor %vm852, %vm853
    %v855 = vsel %vm854, %v847, %v851
    %v856 = vand.u32 2147483647, %v846
    %vm857 = vcmp.eq.f32.partialorder %v856, 8.507059e+37
    %v858 = vand.u32 %v846, 2147483648
    %v859 = vor.u32 1.1754944e-38, %v858
    %v860 = vsel %vm857, %v859, %v855
    %v861 = vmul.f32 1.0, %v860
    %v862 = vtanh.pop %v842
    %v863 = vmul.f32 %v861, %v724
    %865 = vrot.lane.b32.xlu0 %v862, 64
    %v866 = vpop.permute.xlu0 %865
    %v868 = vmul.f32 %v861, %v866
    %870 = vrot.lane.b32.xlu0 %v868, 32
    %v871 = vpop.permute.xlu0 %870
    %v873 = vadd.f32 %v863, %v871
    %v874 = vtanh.pop %v873
    %876 = vrot.lane.b32.xlu0 %v874, 64
    %v877 = vpop.permute.xlu0 %876
    %v879 = vmul.f32 %v861, %v877
    %v880 = vsel %vm214, %v818, 0
    %882 = vmatpush.msra.mxu0 0.0
    %883 = vmatpush.msra.mxu0 0.0
    %884 = vmatpush.msra.mxu0 0.0
    %885 = vmatpush.msra.mxu0 0.0
    %886 = vmatpush.msra.mxu0 0.0
    %887 = vmatpush.msra.mxu0 0.0
    %888 = vmatpush.msra.mxu0 0.0
    %889 = vmatpush.msra.mxu0 0.0
    %890 = vmatpush.msra.mxu0 0.0
    %891 = vmatpush.msra.mxu0 0.0
    %892 = vmatpush.msra.mxu0 0.0
    %893 = vmatpush.msra.mxu0 0.0
    %894 = vmatpush.msra.mxu0 %v125
    %895 = vmatpush.msra.mxu0 %v124
    %896 = vmatpush.msra.mxu0 %v123
    %897 = vmatpush.msra.mxu0 %v122
    %898 = vmatmul.f32.gmra.mxu0 %v880
    %v899 = vpop.f32.mrf.mxu0
    %v900 = vadd.f32 0.0, %v899
    %901 = vdwg.mxu0
    %903 = vrot.lane.b32.xlu0 %v879, 32
    %v904 = vpop.permute.xlu0 %903
    %v905 = vsel %vm214, %v904, 0
    %907 = vmatpush.msra.mxu0 0.0
    %908 = vmatpush.msra.mxu0 0.0
    %909 = vmatpush.msra.mxu0 0.0
    %910 = vmatpush.msra.mxu0 0.0
    %911 = vmatpush.msra.mxu0 0.0
    %912 = vmatpush.msra.mxu0 0.0
    %913 = vmatpush.msra.mxu0 0.0
    %914 = vmatpush.msra.mxu0 0.0
    %915 = vmatpush.msra.mxu0 0.0
    %916 = vmatpush.msra.mxu0 0.0
    %917 = vmatpush.msra.mxu0 0.0
    %918 = vmatpush.msra.mxu0 0.0
    %919 = vmatpush.msra.mxu0 %v121
    %920 = vmatpush.msra.mxu0 %v120
    %921 = vmatpush.msra.mxu0 %v119
    %922 = vmatpush.msra.mxu0 %v118
    %923 = vmatmul.f32.gmra.mxu0 %v905
    %v924 = vpop.f32.mrf.mxu0
    %v925 = vadd.f32 %v900, %v924
    %926 = vdwg.mxu0
    %v927 = vadd.f32 %v925, %v128
    %v928 = vxor.u32 %v927, 2147483648
    %v929 = vmul.f32 %v928, 1.442695
    %v930 = vpow.pop %v929
    %v931 = vadd.f32 %v930, 1.0
    %v932 = vrcp.pop %v931
    %v933 = vmul.f32 %v931, %v932
    %v934 = vsub.f32 1.0, %v933
    %v935 = vmul.f32 %v932, %v934
    %v936 = vadd.f32 %v932, %v935
    %vm937 = vweird.f32 %v931
    %vm938 = vweird.f32 %v932
    %vm939 = vmor %vm937, %vm938
    %v940 = vsel %vm939, %v932, %v936
    %v941 = vand.u32 2147483647, %v931
    %vm942 = vcmp.eq.f32.partialorder %v941, 8.507059e+37
    %v943 = vand.u32 %v931, 2147483648
    %v944 = vor.u32 1.1754944e-38, %v943
    %v945 = vsel %vm942, %v944, %v940
    %v946 = vmul.f32 1.0, %v945
    %v947 = vtanh.pop %v927
    %v948 = vmul.f32 %v946, %v809
    %950 = vrot.lane.b32.xlu0 %v947, 64
    %v951 = vpop.permute.xlu0 %950
    %v953 = vmul.f32 %v946, %v951
    %955 = vrot.lane.b32.xlu0 %v953, 32
    %v956 = vpop.permute.xlu0 %955
    %v958 = vadd.f32 %v948, %v956
    %v959 = vtanh.pop %v958
    %961 = vrot.lane.b32.xlu0 %v959, 64
    %v962 = vpop.permute.xlu0 %961
    %v964 = vmul.f32 %v946, %v962
    %966 = vrot.lane.b32.xlu0 %v964, 32
    %v967 = vpop.permute.xlu0 %966
    %s969 = scalar_lea.vmem [#allocation15], 32
    %970 = vst.msk [vmem:[%s969] sm:$0xff] %vm214, %v967
    %971 = vmatpush.msra.mxu0 0.0
    %972 = vmatpush.msra.mxu0 0.0
    %973 = vmatpush.msra.mxu0 0.0
    %974 = vmatpush.msra.mxu0 0.0
    %975 = vmatpush.msra.mxu0 0.0
    %976 = vmatpush.msra.mxu0 0.0
    %977 = vmatpush.msra.mxu0 0.0
    %978 = vmatpush.msra.mxu0 0.0
    %979 = vmatpush.msra.mxu0 0.0
    %980 = vmatpush.msra.mxu0 0.0
    %981 = vmatpush.msra.mxu0 0.0
    %982 = vmatpush.msra.mxu0 0.0
    %983 = vmatpush.msra.mxu0 %v117
    %984 = vmatpush.msra.mxu0 %v116
    %985 = vmatpush.msra.mxu0 %v115
    %986 = vmatpush.msra.mxu0 %v114
    %987 = vmatmul.f32.gmra.mxu0 %v905
    %v988 = vpop.f32.mrf.mxu0
    %v989 = vadd.f32 0.0, %v988
    %990 = vdwg.mxu0
    %v991 = vadd.f32 %v202, %v989
    %v992 = vxor.u32 %v991, 2147483648
    %v993 = vmul.f32 %v992, 1.442695
    %v994 = vpow.pop %v993
    %v995 = vadd.f32 %v994, 1.0
    %v996 = vrcp.pop %v995
    %v997 = vmul.f32 %v995, %v996
    %v998 = vsub.f32 1.0, %v997
    %v999 = vmul.f32 %v996, %v998
    %v1000 = vadd.f32 %v996, %v999
    %vm1001 = vweird.f32 %v995
    %vm1002 = vweird.f32 %v996
    %vm1003 = vmor %vm1001, %vm1002
    %v1004 = vsel %vm1003, %v996, %v1000
    %v1005 = vand.u32 2147483647, %v995
    %vm1006 = vcmp.eq.f32.partialorder %v1005, 8.507059e+37
    %v1007 = vand.u32 %v995, 2147483648
    %v1008 = vor.u32 1.1754944e-38, %v1007
    %v1009 = vsel %vm1006, %v1008, %v1004
    %v1010 = vmul.f32 1.0, %v1009
    %v1011 = vtanh.pop %v991
    %v1012 = vmul.f32 %v1010, %v873
    %1014 = vrot.lane.b32.xlu0 %v1011, 64
    %v1015 = vpop.permute.xlu0 %1014
    %v1017 = vmul.f32 %v1010, %v1015
    %1019 = vrot.lane.b32.xlu0 %v1017, 32
    %v1020 = vpop.permute.xlu0 %1019
    %v1022 = vadd.f32 %v1012, %v1020
    %v1023 = vtanh.pop %v1022
    %1025 = vrot.lane.b32.xlu0 %v1023, 64
    %v1026 = vpop.permute.xlu0 %1025
    %v1028 = vmul.f32 %v1010, %v1026
    %v1029 = vsel %vm214, %v967, 0
    %1031 = vmatpush.msra.mxu0 0.0
    %1032 = vmatpush.msra.mxu0 0.0
    %1033 = vmatpush.msra.mxu0 0.0
    %1034 = vmatpush.msra.mxu0 0.0
    %1035 = vmatpush.msra.mxu0 0.0
    %1036 = vmatpush.msra.mxu0 0.0
    %1037 = vmatpush.msra.mxu0 0.0
    %1038 = vmatpush.msra.mxu0 0.0
    %1039 = vmatpush.msra.mxu0 0.0
    %1040 = vmatpush.msra.mxu0 0.0
    %1041 = vmatpush.msra.mxu0 0.0
    %1042 = vmatpush.msra.mxu0 0.0
    %1043 = vmatpush.msra.mxu0 %v125
    %1044 = vmatpush.msra.mxu0 %v124
    %1045 = vmatpush.msra.mxu0 %v123
    %1046 = vmatpush.msra.mxu0 %v122
    %1047 = vmatmul.f32.gmra.mxu0 %v1029
    %v1048 = vpop.f32.mrf.mxu0
    %v1049 = vadd.f32 0.0, %v1048
    %1050 = vdwg.mxu0
    %1052 = vrot.lane.b32.xlu0 %v1028, 32
    %v1053 = vpop.permute.xlu0 %1052
    %v1054 = vsel %vm214, %v1053, 0
    %1056 = vmatpush.msra.mxu0 0.0
    %1057 = vmatpush.msra.mxu0 0.0
    %1058 = vmatpush.msra.mxu0 0.0
    %1059 = vmatpush.msra.mxu0 0.0
    %1060 = vmatpush.msra.mxu0 0.0
    %1061 = vmatpush.msra.mxu0 0.0
    %1062 = vmatpush.msra.mxu0 0.0
    %1063 = vmatpush.msra.mxu0 0.0
    %1064 = vmatpush.msra.mxu0 0.0
    %1065 = vmatpush.msra.mxu0 0.0
    %1066 = vmatpush.msra.mxu0 0.0
    %1067 = vmatpush.msra.mxu0 0.0
    %1068 = vmatpush.msra.mxu0 %v121
    %1069 = vmatpush.msra.mxu0 %v120
    %1070 = vmatpush.msra.mxu0 %v119
    %1071 = vmatpush.msra.mxu0 %v118
    %1072 = vmatmul.f32.gmra.mxu0 %v1054
    %v1073 = vpop.f32.mrf.mxu0
    %v1074 = vadd.f32 %v1049, %v1073
    %1075 = vdwg.mxu0
    %v1076 = vadd.f32 %v1074, %v128
    %v1077 = vxor.u32 %v1076, 2147483648
    %v1078 = vmul.f32 %v1077, 1.442695
    %v1079 = vpow.pop %v1078
    %v1080 = vadd.f32 %v1079, 1.0
    %v1081 = vrcp.pop %v1080
    %v1082 = vmul.f32 %v1080, %v1081
    %v1083 = vsub.f32 1.0, %v1082
    %v1084 = vmul.f32 %v1081, %v1083
    %v1085 = vadd.f32 %v1081, %v1084
    %vm1086 = vweird.f32 %v1080
    %vm1087 = vweird.f32 %v1081
    %vm1088 = vmor %vm1086, %vm1087
    %v1089 = vsel %vm1088, %v1081, %v1085
    %v1090 = vand.u32 2147483647, %v1080
    %vm1091 = vcmp.eq.f32.partialorder %v1090, 8.507059e+37
    %v1092 = vand.u32 %v1080, 2147483648
    %v1093 = vor.u32 1.1754944e-38, %v1092
    %v1094 = vsel %vm1091, %v1093, %v1089
    %v1095 = vmul.f32 1.0, %v1094
    %v1096 = vtanh.pop %v1076
    %v1097 = vmul.f32 %v1095, %v958
    %1099 = vrot.lane.b32.xlu0 %v1096, 64
    %v1100 = vpop.permute.xlu0 %1099
    %v1102 = vmul.f32 %v1095, %v1100
    %1104 = vrot.lane.b32.xlu0 %v1102, 32
    %v1105 = vpop.permute.xlu0 %1104
    %v1107 = vadd.f32 %v1097, %v1105
    %v1108 = vtanh.pop %v1107
    %1110 = vrot.lane.b32.xlu0 %v1108, 64
    %v1111 = vpop.permute.xlu0 %1110
    %v1113 = vmul.f32 %v1095, %v1111
    %1115 = vrot.lane.b32.xlu0 %v1113, 32
    %v1116 = vpop.permute.xlu0 %1115
    %s1118 = scalar_lea.vmem [#allocation15], 40
    %1119 = vst.msk [vmem:[%s1118] sm:$0xff] %vm214, %v1116
    %1120 = vmatpush.msra.mxu0 0.0
    %1121 = vmatpush.msra.mxu0 0.0
    %1122 = vmatpush.msra.mxu0 0.0
    %1123 = vmatpush.msra.mxu0 0.0
    %1124 = vmatpush.msra.mxu0 0.0
    %1125 = vmatpush.msra.mxu0 0.0
    %1126 = vmatpush.msra.mxu0 0.0
    %1127 = vmatpush.msra.mxu0 0.0
    %1128 = vmatpush.msra.mxu0 0.0
    %1129 = vmatpush.msra.mxu0 0.0
    %1130 = vmatpush.msra.mxu0 0.0
    %1131 = vmatpush.msra.mxu0 0.0
    %1132 = vmatpush.msra.mxu0 %v117
    %1133 = vmatpush.msra.mxu0 %v116
    %1134 = vmatpush.msra.mxu0 %v115
    %1135 = vmatpush.msra.mxu0 %v114
    %1136 = vmatmul.f32.gmra.mxu0 %v1054
    %v1137 = vpop.f32.mrf.mxu0
    %v1138 = vadd.f32 0.0, %v1137
    %1139 = vdwg.mxu0
    %v1140 = vadd.f32 %v205, %v1138
    %v1141 = vxor.u32 %v1140, 2147483648
    %v1142 = vmul.f32 %v1141, 1.442695
    %v1143 = vpow.pop %v1142
    %v1144 = vadd.f32 %v1143, 1.0
    %v1145 = vrcp.pop %v1144
    %v1146 = vmul.f32 %v1144, %v1145
    %v1147 = vsub.f32 1.0, %v1146
    %v1148 = vmul.f32 %v1145, %v1147
    %v1149 = vadd.f32 %v1145, %v1148
    %vm1150 = vweird.f32 %v1144
    %vm1151 = vweird.f32 %v1145
    %vm1152 = vmor %vm1150, %vm1151
    %v1153 = vsel %vm1152, %v1145, %v1149
    %v1154 = vand.u32 2147483647, %v1144
    %vm1155 = vcmp.eq.f32.partialorder %v1154, 8.507059e+37
    %v1156 = vand.u32 %v1144, 2147483648
    %v1157 = vor.u32 1.1754944e-38, %v1156
    %v1158 = vsel %vm1155, %v1157, %v1153
    %v1159 = vmul.f32 1.0, %v1158
    %v1160 = vtanh.pop %v1140
    %v1161 = vmul.f32 %v1159, %v1022
    %1163 = vrot.lane.b32.xlu0 %v1160, 64
    %v1164 = vpop.permute.xlu0 %1163
    %v1166 = vmul.f32 %v1159, %v1164
    %1168 = vrot.lane.b32.xlu0 %v1166, 32
    %v1169 = vpop.permute.xlu0 %1168
    %v1171 = vadd.f32 %v1161, %v1169
    %v1172 = vtanh.pop %v1171
    %1174 = vrot.lane.b32.xlu0 %v1172, 64
    %v1175 = vpop.permute.xlu0 %1174
    %v1177 = vmul.f32 %v1159, %v1175
    %v1178 = vsel %vm214, %v1116, 0
    %1180 = vmatpush.msra.mxu0 0.0
    %1181 = vmatpush.msra.mxu0 0.0
    %1182 = vmatpush.msra.mxu0 0.0
    %1183 = vmatpush.msra.mxu0 0.0
    %1184 = vmatpush.msra.mxu0 0.0
    %1185 = vmatpush.msra.mxu0 0.0
    %1186 = vmatpush.msra.mxu0 0.0
    %1187 = vmatpush.msra.mxu0 0.0
    %1188 = vmatpush.msra.mxu0 0.0
    %1189 = vmatpush.msra.mxu0 0.0
    %1190 = vmatpush.msra.mxu0 0.0
    %1191 = vmatpush.msra.mxu0 0.0
    %1192 = vmatpush.msra.mxu0 %v125
    %1193 = vmatpush.msra.mxu0 %v124
    %1194 = vmatpush.msra.mxu0 %v123
    %1195 = vmatpush.msra.mxu0 %v122
    %1196 = vmatmul.f32.gmra.mxu0 %v1178
    %v1197 = vpop.f32.mrf.mxu0
    %v1198 = vadd.f32 0.0, %v1197
    %1199 = vdwg.mxu0
    %1201 = vrot.lane.b32.xlu0 %v1177, 32
    %v1202 = vpop.permute.xlu0 %1201
    %v1203 = vsel %vm214, %v1202, 0
    %1205 = vmatpush.msra.mxu0 0.0
    %1206 = vmatpush.msra.mxu0 0.0
    %1207 = vmatpush.msra.mxu0 0.0
    %1208 = vmatpush.msra.mxu0 0.0
    %1209 = vmatpush.msra.mxu0 0.0
    %1210 = vmatpush.msra.mxu0 0.0
    %1211 = vmatpush.msra.mxu0 0.0
    %1212 = vmatpush.msra.mxu0 0.0
    %1213 = vmatpush.msra.mxu0 0.0
    %1214 = vmatpush.msra.mxu0 0.0
    %1215 = vmatpush.msra.mxu0 0.0
    %1216 = vmatpush.msra.mxu0 0.0
    %1217 = vmatpush.msra.mxu0 %v121
    %1218 = vmatpush.msra.mxu0 %v120
    %1219 = vmatpush.msra.mxu0 %v119
    %1220 = vmatpush.msra.mxu0 %v118
    %1221 = vmatmul.f32.gmra.mxu0 %v1203
    %v1222 = vpop.f32.mrf.mxu0
    %v1223 = vadd.f32 %v1198, %v1222
    %1224 = vdwg.mxu0
    %v1225 = vadd.f32 %v1223, %v128
    %v1226 = vxor.u32 %v1225, 2147483648
    %v1227 = vmul.f32 %v1226, 1.442695
    %v1228 = vpow.pop %v1227
    %v1229 = vadd.f32 %v1228, 1.0
    %v1230 = vrcp.pop %v1229
    %v1231 = vmul.f32 %v1229, %v1230
    %v1232 = vsub.f32 1.0, %v1231
    %v1233 = vmul.f32 %v1230, %v1232
    %v1234 = vadd.f32 %v1230, %v1233
    %vm1235 = vweird.f32 %v1229
    %vm1236 = vweird.f32 %v1230
    %vm1237 = vmor %vm1235, %vm1236
    %v1238 = vsel %vm1237, %v1230, %v1234
    %v1239 = vand.u32 2147483647, %v1229
    %vm1240 = vcmp.eq.f32.partialorder %v1239, 8.507059e+37
    %v1241 = vand.u32 %v1229, 2147483648
    %v1242 = vor.u32 1.1754944e-38, %v1241
    %v1243 = vsel %vm1240, %v1242, %v1238
    %v1244 = vmul.f32 1.0, %v1243
    %v1245 = vtanh.pop %v1225
    %v1246 = vmul.f32 %v1244, %v1107
    %1248 = vrot.lane.b32.xlu0 %v1245, 64
    %v1249 = vpop.permute.xlu0 %1248
    %v1251 = vmul.f32 %v1244, %v1249
    %1253 = vrot.lane.b32.xlu0 %v1251, 32
    %v1254 = vpop.permute.xlu0 %1253
    %v1256 = vadd.f32 %v1246, %v1254
    %v1257 = vtanh.pop %v1256
    %1259 = vrot.lane.b32.xlu0 %v1257, 64
    %v1260 = vpop.permute.xlu0 %1259
    %v1262 = vmul.f32 %v1244, %v1260
    %1264 = vrot.lane.b32.xlu0 %v1262, 32
    %v1265 = vpop.permute.xlu0 %1264
    %s1267 = scalar_lea.vmem [#allocation15], 48
    %1268 = vst.msk [vmem:[%s1267] sm:$0xff] %vm214, %v1265
    %1269 = vmatpush.msra.mxu0 0.0
    %1270 = vmatpush.msra.mxu0 0.0
    %1271 = vmatpush.msra.mxu0 0.0
    %1272 = vmatpush.msra.mxu0 0.0
    %1273 = vmatpush.msra.mxu0 0.0
    %1274 = vmatpush.msra.mxu0 0.0
    %1275 = vmatpush.msra.mxu0 0.0
    %1276 = vmatpush.msra.mxu0 0.0
    %1277 = vmatpush.msra.mxu0 0.0
    %1278 = vmatpush.msra.mxu0 0.0
    %1279 = vmatpush.msra.mxu0 0.0
    %1280 = vmatpush.msra.mxu0 0.0
    %1281 = vmatpush.msra.mxu0 %v117
    %1282 = vmatpush.msra.mxu0 %v116
    %1283 = vmatpush.msra.mxu0 %v115
    %1284 = vmatpush.msra.mxu0 %v114
    %1285 = vmatmul.f32.gmra.mxu0 %v1203
    %v1286 = vpop.f32.mrf.mxu0
    %v1287 = vadd.f32 0.0, %v1286
    %1288 = vdwg.mxu0
    %v1289 = vadd.f32 %v208, %v1287
    %v1290 = vxor.u32 %v1289, 2147483648
    %v1291 = vmul.f32 %v1290, 1.442695
    %v1292 = vpow.pop %v1291
    %v1293 = vadd.f32 %v1292, 1.0
    %v1294 = vrcp.pop %v1293
    %v1295 = vmul.f32 %v1293, %v1294
    %v1296 = vsub.f32 1.0, %v1295
    %v1297 = vmul.f32 %v1294, %v1296
    %v1298 = vadd.f32 %v1294, %v1297
    %vm1299 = vweird.f32 %v1293
    %vm1300 = vweird.f32 %v1294
    %vm1301 = vmor %vm1299, %vm1300
    %v1302 = vsel %vm1301, %v1294, %v1298
    %v1303 = vand.u32 2147483647, %v1293
    %vm1304 = vcmp.eq.f32.partialorder %v1303, 8.507059e+37
    %v1305 = vand.u32 %v1293, 2147483648
    %v1306 = vor.u32 1.1754944e-38, %v1305
    %v1307 = vsel %vm1304, %v1306, %v1302
    %v1308 = vmul.f32 1.0, %v1307
    %v1309 = vtanh.pop %v1289
    %v1310 = vmul.f32 %v1308, %v1171
    %1312 = vrot.lane.b32.xlu0 %v1309, 64
    %v1313 = vpop.permute.xlu0 %1312
    %v1315 = vmul.f32 %v1308, %v1313
    %1317 = vrot.lane.b32.xlu0 %v1315, 32
    %v1318 = vpop.permute.xlu0 %1317
    %v1320 = vadd.f32 %v1310, %v1318
    %v1321 = vtanh.pop %v1320
    %1323 = vrot.lane.b32.xlu0 %v1321, 64
    %v1324 = vpop.permute.xlu0 %1323
    %v1326 = vmul.f32 %v1308, %v1324
    %v1327 = vsel %vm214, %v1265, 0
    %1329 = vmatpush.msra.mxu0 0.0
    %1330 = vmatpush.msra.mxu0 0.0
    %1331 = vmatpush.msra.mxu0 0.0
    %1332 = vmatpush.msra.mxu0 0.0
    %1333 = vmatpush.msra.mxu0 0.0
    %1334 = vmatpush.msra.mxu0 0.0
    %1335 = vmatpush.msra.mxu0 0.0
    %1336 = vmatpush.msra.mxu0 0.0
    %1337 = vmatpush.msra.mxu0 0.0
    %1338 = vmatpush.msra.mxu0 0.0
    %1339 = vmatpush.msra.mxu0 0.0
    %1340 = vmatpush.msra.mxu0 0.0
    %1341 = vmatpush.msra.mxu0 %v125
    %1342 = vmatpush.msra.mxu0 %v124
    %1343 = vmatpush.msra.mxu0 %v123
    %1344 = vmatpush.msra.mxu0 %v122
    %1345 = vmatmul.f32.gmra.mxu0 %v1327
    %v1346 = vpop.f32.mrf.mxu0
    %v1347 = vadd.f32 0.0, %v1346
    %1348 = vdwg.mxu0
    %1350 = vrot.lane.b32.xlu0 %v1326, 32
    %v1351 = vpop.permute.xlu0 %1350
    %v1352 = vsel %vm214, %v1351, 0
    %1354 = vmatpush.msra.mxu0 0.0
    %1355 = vmatpush.msra.mxu0 0.0
    %1356 = vmatpush.msra.mxu0 0.0
    %1357 = vmatpush.msra.mxu0 0.0
    %1358 = vmatpush.msra.mxu0 0.0
    %1359 = vmatpush.msra.mxu0 0.0
    %1360 = vmatpush.msra.mxu0 0.0
    %1361 = vmatpush.msra.mxu0 0.0
    %1362 = vmatpush.msra.mxu0 0.0
    %1363 = vmatpush.msra.mxu0 0.0
    %1364 = vmatpush.msra.mxu0 0.0
    %1365 = vmatpush.msra.mxu0 0.0
    %1366 = vmatpush.msra.mxu0 %v121
    %1367 = vmatpush.msra.mxu0 %v120
    %1368 = vmatpush.msra.mxu0 %v119
    %1369 = vmatpush.msra.mxu0 %v118
    %1370 = vmatmul.f32.gmra.mxu0 %v1352
    %v1371 = vpop.f32.mrf.mxu0
    %v1372 = vadd.f32 %v1347, %v1371
    %1373 = vdwg.mxu0
    %v1374 = vadd.f32 %v1372, %v128
    %v1375 = vxor.u32 %v1374, 2147483648
    %v1376 = vmul.f32 %v1375, 1.442695
    %v1377 = vpow.pop %v1376
    %v1378 = vadd.f32 %v1377, 1.0
    %v1379 = vrcp.pop %v1378
    %v1380 = vmul.f32 %v1378, %v1379
    %v1381 = vsub.f32 1.0, %v1380
    %v1382 = vmul.f32 %v1379, %v1381
    %v1383 = vadd.f32 %v1379, %v1382
    %vm1384 = vweird.f32 %v1378
    %vm1385 = vweird.f32 %v1379
    %vm1386 = vmor %vm1384, %vm1385
    %v1387 = vsel %vm1386, %v1379, %v1383
    %v1388 = vand.u32 2147483647, %v1378
    %vm1389 = vcmp.eq.f32.partialorder %v1388, 8.507059e+37
    %v1390 = vand.u32 %v1378, 2147483648
    %v1391 = vor.u32 1.1754944e-38, %v1390
    %v1392 = vsel %vm1389, %v1391, %v1387
    %v1393 = vmul.f32 1.0, %v1392
    %v1394 = vtanh.pop %v1374
    %v1395 = vmul.f32 %v1393, %v1256
    %1397 = vrot.lane.b32.xlu0 %v1394, 64
    %v1398 = vpop.permute.xlu0 %1397
    %v1400 = vmul.f32 %v1393, %v1398
    %1402 = vrot.lane.b32.xlu0 %v1400, 32
    %v1403 = vpop.permute.xlu0 %1402
    %v1405 = vadd.f32 %v1395, %v1403
    %v1406 = vtanh.pop %v1405
    %1408 = vrot.lane.b32.xlu0 %v1406, 64
    %v1409 = vpop.permute.xlu0 %1408
    %v1411 = vmul.f32 %v1393, %v1409
    %1413 = vrot.lane.b32.xlu0 %v1411, 32
    %v1414 = vpop.permute.xlu0 %1413
    %s1416 = scalar_lea.vmem [#allocation15], 56
    %1417 = vst.msk [vmem:[%s1416] sm:$0xff] %vm214, %v1414
    %1419 = vst.msk [vmem:[#allocation2] sm:$0xff] %vm214, %v1351
    %1421 = vrot.lane.b32.xlu0 %v1320, 96
    %v1422 = vpop.permute.xlu0 %1421
    %1424 = vst.msk [vmem:[#allocation3] sm:$0xff] %vm214, %v1422
    %1425 = vst.msk [vmem:[#allocation4] sm:$0xff] %vm214, %v1414
    %1427 = vrot.lane.b32.xlu0 %v1405, 96
    %v1428 = vpop.permute.xlu0 %1427
    %1430 = vst.msk [vmem:[#allocation5] sm:$0xff] %vm214, %v1428
    // Predicated region
    $region54: #{tpu_custom_call.1} parent=1 // pred_check
      _
    $region55: #{tpu_custom_call.1} parent=1 // pred_check_branch
      %1432 = sbr.rel (0) target = $region57
    $region56: #{tpu_custom_call.1} parent=1 // pred_region
      %1434 = vsyncadd [#allocation8], 0
      %s1435 = sshll.u32 [#allocation15], 4
      %s1436 = int_to_ptr.vmem [resolvable:$true] %s1435
      %s1437 = sshll.u32 %s7, 4
      %s1438 = int_to_ptr.hbm [resolvable:$true] %s1437
      %1443 = dma.vmem_to_hbm [thread:$0]  %s1436, 1024, %s1438, [#allocation8], 128, 128, 8
    $region57: #{tpu_custom_call.1} parent=1 // pred_fallthru
      _
    // Predicated region
    $region58: #{tpu_custom_call.1} parent=1 // pred_check
      _
    $region59: #{tpu_custom_call.1} parent=1 // pred_check_branch
      %1445 = sbr.rel (0) target = $region61
    $region60: #{tpu_custom_call.1} parent=1 // pred_region
      %1447 = dma.done [#allocation8], 1024
    $region61: #{tpu_custom_call.1} parent=1 // pred_fallthru
      _
    %1448 = vsyncpa [#allocation7], 1
    %1449 = vsyncpa [#allocation10], 1
    %1450 = vsyncpa [#allocation13], 1
    %1451 = vsyncpa [#allocation8], 1

</llo_original>
